<compile_context>
chip_gen: v5e
topology: v5e:2x2
jax: 0.10.0
libtpu: 0.0.40
codegen_flags: <defaults>
</compile_context>

<pallas_src>
import jax
import jax.numpy as jnp
from jax.experimental import pallas as pl
from jax.experimental.pallas import tpu as pltpu

# ----------------------------- sizes (small, synthetic) ----------------------
B = 2             # batch
V = 256           # number of vertices (real SMPL: 6890)
NUM_BETAS = 10
NUM_JOINTS = 24
POSE_BASIS = 207                      # 23 * 9
BLEND_BASIS = NUM_BETAS + POSE_BASIS  # 217
NUM_OUT_JOINTS = 19                   # cocoplus

# standard SMPL kinematic tree (parent of joint i); parent[0] unused in chain
PARENTS = (0, 0, 0, 0, 1, 2, 3, 4, 5, 6, 7, 8, 9, 9, 9, 12, 13, 14, 16, 17,
           18, 19, 20, 21)


# ----------------------------- Pallas fused kernel ----------------------------
def _fused_smpl_kernel(bf_ref, dirs_ref, vtemp_ref, wt_ref, a16t_ref,
                       trans_ref, jreg_ref, verts_ref, joints_ref):
    """One (batch, vertex-tile) step of blend + skin + joint regression.

    bf_ref    : (1, 1, 217)   [beta | pose_feature] row for this batch
    dirs_ref  : (3, 217, tv)  planar fused [shapedirs; posedirs] tile
    vtemp_ref : (3, tv)       planar template vertices tile
    wt_ref    : (24, tv)      transposed skinning weights tile
    a16t_ref  : (1, 16, 24)   transposed flattened 4x4 joint transforms
    trans_ref : (1, 3, 1)     root translation
    jreg_ref  : (tv, 19)      cocoplus regressor tile
    verts_ref : (1, 3, tv)    planar vertices out (lane-dense)
    joints_ref: (1, 3, 19)    planar output joints (accumulated over tiles)
    """
    vi = pl.program_id(1)

    bf = bf_ref[0]                       # (1, 217)
    vt = vtemp_ref[...]                  # (3, tv)

    # fused shape+pose blendshapes, one planar row per coordinate: (1, tv)
    vp = [jnp.dot(bf, dirs_ref[c], preferred_element_type=jnp.float32)
          + vt[c:c + 1]
          for c in range(3)]

    # per-vertex 4x4 transforms in planar form: T16[4r+k, v] = T[v][r][k]
    t16 = jnp.dot(a16t_ref[0], wt_ref[...],
                  preferred_element_type=jnp.float32)   # (16, tv)

    rows = []
    for r in range(3):
        rows.append(t16[4 * r + 0:4 * r + 1] * vp[0]
                    + t16[4 * r + 1:4 * r + 2] * vp[1]
                    + t16[4 * r + 2:4 * r + 3] * vp[2]
                    + t16[4 * r + 3:4 * r + 4])
    verts = jnp.concatenate(rows, axis=0) + trans_ref[0]   # (3, tv)
    verts_ref[...] = verts[None]

    # accumulate the cocoplus joint regressor across vertex tiles
    @pl.when(vi == 0)
    def _():
        joints_ref[...] = jnp.zeros_like(joints_ref)

    joints_ref[...] += jnp.dot(verts, jreg_ref[...],
                               preferred_element_type=jnp.float32)[None]


def _pick_vertex_tile(v):
    for t in (1024, 512, 256, 128):
        if v % t == 0:
            return t
    # TODO(synk): pad V (real SMPL V=6890) to a multiple of 128 before tiling.
    return v


def fused_smpl(bf, dirs, vtemp_planar, weights_t, a16t, trans3, joint_reg):
    """Runs the fused blend + skin + joint-regressor pipeline.

    Returns (verts_planar (B, 3, V), joints_planar (B, 3, 19)).
    """
    b = bf.shape[0]
    v = vtemp_planar.shape[1]
    tv = _pick_vertex_tile(v)
    grid = (b, v // tv)

    return pl.pallas_call(
        _fused_smpl_kernel,
        grid=grid,
        in_specs=[
            pl.BlockSpec((1, 1, BLEND_BASIS), lambda bi, vi: (bi, 0, 0)),
            pl.BlockSpec((3, BLEND_BASIS, tv), lambda bi, vi: (0, 0, vi)),
            pl.BlockSpec((3, tv), lambda bi, vi: (0, vi)),
            pl.BlockSpec((NUM_JOINTS, tv), lambda bi, vi: (0, vi)),
            pl.BlockSpec((1, 16, NUM_JOINTS), lambda bi, vi: (bi, 0, 0)),
            pl.BlockSpec((1, 3, 1), lambda bi, vi: (bi, 0, 0)),
            pl.BlockSpec((tv, NUM_OUT_JOINTS), lambda bi, vi: (vi, 0)),
        ],
        out_specs=[
            pl.BlockSpec((1, 3, tv), lambda bi, vi: (bi, 0, vi)),
            pl.BlockSpec((1, 3, NUM_OUT_JOINTS), lambda bi, vi: (bi, 0, 0)),
        ],
        out_shape=[
            jax.ShapeDtypeStruct((b, 3, v), jnp.float32),
            jax.ShapeDtypeStruct((b, 3, NUM_OUT_JOINTS), jnp.float32),
        ],
        compiler_params=pltpu.CompilerParams(
            dimension_semantics=("parallel", "arbitrary")),
    )(bf, dirs, vtemp_planar, weights_t, a16t, trans3, joint_reg)


# ----------------------------- param preprocessing ----------------------------
def prepare_params(params):
    """One-time reshuffle of the SMPL buffers into the planar kernel layout."""
    v_template = params["v_template"]          # (V, 3)
    shapedirs = params["shapedirs"]            # (10, V*3), col = v*3 + c
    posedirs = params["posedirs"]              # (207, V*3)
    j_reg = params["J_regressor"]              # (V, 24)
    v = v_template.shape[0]

    sh3 = shapedirs.reshape(NUM_BETAS, v, 3)
    po3 = posedirs.reshape(POSE_BASIS, v, 3)
    dirs = jnp.concatenate(
        [jnp.transpose(sh3, (2, 0, 1)), jnp.transpose(po3, (2, 0, 1))],
        axis=1)                                # (3, 217, V)

    # rest-pose joint regressor folded into the shape blendshapes:
    # joints_rest = beta @ J_dirs + J_template  (== J_regressor applied to
    # v_shaped), so v_shaped never has to be materialized.
    j_dirs = jnp.einsum("kvc,vj->kjc", sh3, j_reg)            # (10, 24, 3)
    j_template = jnp.einsum("vc,vj->jc", v_template, j_reg)   # (24, 3)

    return {
        "dirs": dirs,
        "v_template_planar": jnp.transpose(v_template, (1, 0)),   # (3, V)
        "weights_t": jnp.transpose(params["weights"], (1, 0)),    # (24, V)
        "J_dirs": j_dirs,
        "J_template": j_template,
        "joint_regressor": params["joint_regressor"],             # (V, 19)
    }


# ----------------------------- plain-JAX glue --------------------------------
def batch_rodrigues(theta):
    """theta (N, 3) axis-angle -> (N, 3, 3) rotation matrices."""
    angle = jnp.sqrt(jnp.sum(theta * theta, axis=1, keepdims=True) + 1e-16)
    r = theta / angle
    c = jnp.cos(angle)[:, :, None]
    s = jnp.sin(angle)[:, :, None]
    rx, ry, rz = r[:, 0], r[:, 1], r[:, 2]
    zeros = jnp.zeros_like(rx)
    k = jnp.stack([zeros, -rz, ry,
                   rz, zeros, -rx,
                   -ry, rx, zeros], axis=1).reshape(-1, 3, 3)
    outer = r[:, :, None] * r[:, None, :]
    eye = jnp.eye(3, dtype=jnp.float32)
    return c * eye[None] + (1.0 - c) * outer + s * k


def batch_global_rigid_transformation(rs, js, parents, rotate_base=True):
    """rs (B,24,3,3), js (B,24,3) -> (new_J (B,24,3), A (B,24,4,4))."""
    n = rs.shape[0]
    if rotate_base:
        rot_x = jnp.array([[1., 0., 0.], [0., -1., 0.], [0., 0., -1.]],
                          dtype=jnp.float32)
        root_rotation = jnp.matmul(rs[:, 0], rot_x)
    else:
        root_rotation = rs[:, 0]
    js = js[..., None]  # (B,24,3,1)

    def make_a(rot, t):
        r_homo = jnp.pad(rot, ((0, 0), (0, 1), (0, 0)))          # (B,4,3)
        t_homo = jnp.concatenate(
            [t, jnp.ones((n, 1, 1), jnp.float32)], axis=1)        # (B,4,1)
        return jnp.concatenate([r_homo, t_homo], axis=2)          # (B,4,4)

    # TODO(synk): sequential 24-joint rigid chain kept in JAX (no hot path).
    results = [make_a(root_rotation, js[:, 0])]
    for i in range(1, len(parents)):
        j_here = js[:, i] - js[:, parents[i]]
        a_here = make_a(rs[:, i], j_here)
        results.append(jnp.matmul(results[parents[i]], a_here))
    results = jnp.stack(results, axis=1)                          # (B,24,4,4)

    new_j = results[:, :, :3, 3]
    js_w0 = jnp.concatenate(
        [js, jnp.zeros((n, len(parents), 1, 1), jnp.float32)], axis=2)
    init_bone = jnp.matmul(results, js_w0)                        # (B,24,4,1)
    init_bone = jnp.pad(init_bone, ((0, 0), (0, 0), (0, 0), (3, 0)))
    a = results - init_bone
    return new_j, a


# ----------------------------- SMPL forward ----------------------------------
def smpl_forward(prep, beta, theta, trans, get_skin=True):
    num_batch = beta.shape[0]

    # pose -> rotation matrices and pose blend feature
    rs = batch_rodrigues(theta.reshape(-1, 3)).reshape(num_batch, NUM_JOINTS,
                                                       3, 3)
    pose_feature = (rs[:, 1:, :, :] - jnp.eye(3, dtype=jnp.float32)
                    ).reshape(num_batch, POSE_BASIS)

    # rest-pose joints directly from beta via the precomputed contraction
    joints_rest = (jnp.einsum("bk,kjc->bjc", beta, prep["J_dirs"])
                   + prep["J_template"][None])                    # (B,24,3)

    # kinematic chain (plain JAX glue — tiny sequential 4x4 chain)
    _, a = batch_global_rigid_transformation(rs, joints_rest, PARENTS,
                                             rotate_base=True)
    a16t = jnp.transpose(a.reshape(num_batch, NUM_JOINTS, 16),
                         (0, 2, 1))                               # (B,16,24)

    # fused [beta | pose_feature] driving the fused blendshape basis
    bf = jnp.concatenate([beta, pose_feature], axis=1
                         ).reshape(num_batch, 1, BLEND_BASIS)
    trans3 = trans.reshape(num_batch, 3, 1)

    # fused blend + LBS skinning + cocoplus regressor (single Pallas kernel)
    verts_p, joints_p = fused_smpl(bf, prep["dirs"],
                                   prep["v_template_planar"],
                                   prep["weights_t"], a16t, trans3,
                                   prep["joint_regressor"])

    verts = jnp.transpose(verts_p, (0, 2, 1))    # (B, V, 3)
    joints = jnp.transpose(joints_p, (0, 2, 1))  # (B, 19, 3)

    if get_skin:
        return verts, joints, rs
    return joints


# ----------------------------- reference (pure jnp) ---------------------------
def smpl_forward_ref(params, beta, theta, trans):
    num_batch = beta.shape[0]
    v = params["v_template"].shape[0]
    rs = batch_rodrigues(theta.reshape(-1, 3)).reshape(num_batch, 24, 3, 3)
    pose_feature = (rs[:, 1:] - jnp.eye(3)).reshape(num_batch, 207)
    v_shaped = (beta @ params["shapedirs"]).reshape(num_batch, v, 3) \
        + params["v_template"]
    jx = v_shaped[:, :, 0] @ params["J_regressor"]
    jy = v_shaped[:, :, 1] @ params["J_regressor"]
    jz = v_shaped[:, :, 2] @ params["J_regressor"]
    joints_rest = jnp.stack([jx, jy, jz], axis=2)
    v_posed = (pose_feature @ params["posedirs"]).reshape(num_batch, v, 3) \
        + v_shaped
    _, a = batch_global_rigid_transformation(rs, joints_rest, PARENTS, True)
    w = jnp.tile(params["weights"][None], (num_batch, 1, 1))
    t = jnp.matmul(w, a.reshape(num_batch, 24, 16)).reshape(num_batch, v, 4, 4)
    vph = jnp.concatenate(
        [v_posed, jnp.ones((num_batch, v, 1), jnp.float32)], axis=2)
    vh = jnp.matmul(t, vph[..., None])
    verts = vh[:, :, :3, 0] + trans.reshape(num_batch, 1, 3)
    jxo = verts[:, :, 0] @ params["joint_regressor"]
    jyo = verts[:, :, 1] @ params["joint_regressor"]
    jzo = verts[:, :, 2] @ params["joint_regressor"]
    joints = jnp.stack([jxo, jyo, jzo], axis=2)
    return verts, joints, rs


# ----------------------------- main -------------------------------------------
if __name__ == "__main__":
    key = jax.random.PRNGKey(0)
    keys = jax.random.split(key, 10)

    # deterministic synthetic "model" buffers (shapes match SMPL semantics)
    v_template = (jax.random.normal(keys[0], (V, 3)) * 0.1).astype(jnp.float32)
    shapedirs = (jax.random.normal(keys[1], (NUM_BETAS, V * 3)) * 0.01
                 ).astype(jnp.float32)
    posedirs = (jax.random.normal(keys[2], (POSE_BASIS, V * 3)) * 0.01
                ).astype(jnp.float32)
    j_reg = jax.random.uniform(keys[3], (V, NUM_JOINTS)).astype(jnp.float32)
    j_reg = j_reg / jnp.sum(j_reg, axis=0, keepdims=True)
    joint_reg = jax.random.uniform(keys[4], (V, NUM_OUT_JOINTS)
                                   ).astype(jnp.float32)
    joint_reg = joint_reg / jnp.sum(joint_reg, axis=0, keepdims=True)
    skin_w = jax.random.uniform(keys[5], (V, NUM_JOINTS)).astype(jnp.float32)
    skin_w = skin_w / jnp.sum(skin_w, axis=1, keepdims=True)

    params = {
        "v_template": v_template,
        "shapedirs": shapedirs,
        "posedirs": posedirs,
        "J_regressor": j_reg,
        "joint_regressor": joint_reg,
        "weights": skin_w,
    }
    prep = prepare_params(params)   # one-time planar / fused layout

    # deterministic inputs
    beta = jax.random.normal(keys[6], (B, NUM_BETAS)).astype(jnp.float32)
    theta = (jax.random.normal(keys[7], (B, 72)) * 0.2).astype(jnp.float32)
    trans = (jax.random.normal(keys[8], (B, 3)) * 0.1).astype(jnp.float32)

    fwd = jax.jit(lambda b, t, tr: smpl_forward(prep, b, t, tr,
                                                get_skin=True))
    verts, joints, rs = fwd(beta, theta, trans)
    jax.block_until_ready((verts, joints, rs))

    # light correctness check vs pure-jnp reference
    verts_r, joints_r, _ = smpl_forward_ref(params, beta, theta, trans)
    assert jnp.max(jnp.abs(verts - verts_r)) < 1e-4
    assert jnp.max(jnp.abs(joints - joints_r)) < 1e-4

    print("KERNEL_OK")
</pallas_src>

<mosaic_0001>
module attributes {stable_mosaic.version = 11 : i64} {
  func.func @_fused_smpl_kernel(%arg0: i32, %arg1: i32, %arg2: memref<1x1x217xf32, #tpu.memory_space<vmem>>, %arg3: memref<3x217x256xf32, #tpu.memory_space<vmem>>, %arg4: memref<3x256xf32, #tpu.memory_space<vmem>>, %arg5: memref<24x256xf32, #tpu.memory_space<vmem>>, %arg6: memref<1x16x24xf32, #tpu.memory_space<vmem>>, %arg7: memref<1x3x1xf32, #tpu.memory_space<vmem>>, %arg8: memref<256x19xf32, #tpu.memory_space<vmem>>, %arg9: memref<1x3x256xf32, #tpu.memory_space<vmem>>, %arg10: memref<1x3x19xf32, #tpu.memory_space<vmem>>) attributes {dimension_semantics = [#tpu.dimension_semantics<parallel>, #tpu.dimension_semantics<arbitrary>], iteration_bounds = array<i64: 2, 1>, scalar_prefetch = 0 : i64, scratch_operands = 0 : i64, tpu.core_type = #tpu.core_type<tc>, window_params = [{transform_indices = @transform_0, window_bounds = array<i64: 1, 1, 217>}, {transform_indices = @transform_1, window_bounds = array<i64: 3, 217, 256>}, {transform_indices = @transform_2, window_bounds = array<i64: 3, 256>}, {transform_indices = @transform_3, window_bounds = array<i64: 24, 256>}, {transform_indices = @transform_4, window_bounds = array<i64: 1, 16, 24>}, {transform_indices = @transform_5, window_bounds = array<i64: 1, 3, 1>}, {transform_indices = @transform_6, window_bounds = array<i64: 256, 19>}, {transform_indices = @transform_7, window_bounds = array<i64: 1, 3, 256>}, {transform_indices = @transform_8, window_bounds = array<i64: 1, 3, 19>}]} {
    %c0 = arith.constant 0 : index
    %c0_0 = arith.constant 0 : index
    %c0_1 = arith.constant 0 : index
    %0 = vector.load %arg2[%c0, %c0_0, %c0_1] : memref<1x1x217xf32, #tpu.memory_space<vmem>>, vector<1x1x217xf32>
    %1 = vector.shape_cast %0 : vector<1x1x217xf32> to vector<1x217xf32>
    %c0_2 = arith.constant 0 : index
    %c0_3 = arith.constant 0 : index
    %2 = vector.load %arg4[%c0_2, %c0_3] : memref<3x256xf32, #tpu.memory_space<vmem>>, vector<3x256xf32>
    %c0_4 = arith.constant 0 : index
    %c0_5 = arith.constant 0 : index
    %c0_6 = arith.constant 0 : index
    %3 = vector.load %arg3[%c0_4, %c0_5, %c0_6] : memref<3x217x256xf32, #tpu.memory_space<vmem>>, vector<1x217x256xf32>
    %4 = vector.shape_cast %3 : vector<1x217x256xf32> to vector<217x256xf32>
    %cst = arith.constant dense<0.000000e+00> : vector<1x256xf32>
    %5 = tpu.matmul %1, %4, %cst {dimension_numbers = #tpu.dot_dimension_numbers<[1], [0], [0], [1], [0, 0, 1, 1], [], []>} : vector<1x217xf32>, vector<217x256xf32>, vector<1x256xf32> -> vector<1x256xf32>
    %6 = vector.extract_strided_slice %2 {offsets = [0, 0], sizes = [1, 256], strides = [1, 1]} : vector<3x256xf32> to vector<1x256xf32>
    %7 = arith.addf %5, %6 : vector<1x256xf32>
    %c1 = arith.constant 1 : index
    %c0_7 = arith.constant 0 : index
    %c0_8 = arith.constant 0 : index
    %8 = vector.load %arg3[%c1, %c0_7, %c0_8] : memref<3x217x256xf32, #tpu.memory_space<vmem>>, vector<1x217x256xf32>
    %9 = vector.shape_cast %8 : vector<1x217x256xf32> to vector<217x256xf32>
    %cst_9 = arith.constant dense<0.000000e+00> : vector<1x256xf32>
    %10 = tpu.matmul %1, %9, %cst_9 {dimension_numbers = #tpu.dot_dimension_numbers<[1], [0], [0], [1], [0, 0, 1, 1], [], []>} : vector<1x217xf32>, vector<217x256xf32>, vector<1x256xf32> -> vector<1x256xf32>
    %11 = vector.extract_strided_slice %2 {offsets = [1, 0], sizes = [1, 256], strides = [1, 1]} : vector<3x256xf32> to vector<1x256xf32>
    %12 = arith.addf %10, %11 : vector<1x256xf32>
    %c2 = arith.constant 2 : index
    %c0_10 = arith.constant 0 : index
    %c0_11 = arith.constant 0 : index
    %13 = vector.load %arg3[%c2, %c0_10, %c0_11] : memref<3x217x256xf32, #tpu.memory_space<vmem>>, vector<1x217x256xf32>
    %14 = vector.shape_cast %13 : vector<1x217x256xf32> to vector<217x256xf32>
    %cst_12 = arith.constant dense<0.000000e+00> : vector<1x256xf32>
    %15 = tpu.matmul %1, %14, %cst_12 {dimension_numbers = #tpu.dot_dimension_numbers<[1], [0], [0], [1], [0, 0, 1, 1], [], []>} : vector<1x217xf32>, vector<217x256xf32>, vector<1x256xf32> -> vector<1x256xf32>
    %16 = vector.extract_strided_slice %2 {offsets = [2, 0], sizes = [1, 256], strides = [1, 1]} : vector<3x256xf32> to vector<1x256xf32>
    %17 = arith.addf %15, %16 : vector<1x256xf32>
    %c0_13 = arith.constant 0 : index
    %c0_14 = arith.constant 0 : index
    %c0_15 = arith.constant 0 : index
    %18 = vector.load %arg6[%c0_13, %c0_14, %c0_15] : memref<1x16x24xf32, #tpu.memory_space<vmem>>, vector<1x16x24xf32>
    %19 = vector.shape_cast %18 : vector<1x16x24xf32> to vector<16x24xf32>
    %c0_16 = arith.constant 0 : index
    %c0_17 = arith.constant 0 : index
    %20 = vector.load %arg5[%c0_16, %c0_17] : memref<24x256xf32, #tpu.memory_space<vmem>>, vector<24x256xf32>
    %cst_18 = arith.constant dense<0.000000e+00> : vector<16x256xf32>
    %21 = tpu.matmul %19, %20, %cst_18 {dimension_numbers = #tpu.dot_dimension_numbers<[1], [0], [0], [1], [0, 0, 1, 1], [], []>} : vector<16x24xf32>, vector<24x256xf32>, vector<16x256xf32> -> vector<16x256xf32>
    %22 = vector.extract_strided_slice %21 {offsets = [0, 0], sizes = [1, 256], strides = [1, 1]} : vector<16x256xf32> to vector<1x256xf32>
    %23 = arith.mulf %22, %7 : vector<1x256xf32>
    %24 = vector.extract_strided_slice %21 {offsets = [1, 0], sizes = [1, 256], strides = [1, 1]} : vector<16x256xf32> to vector<1x256xf32>
    %25 = arith.mulf %24, %12 : vector<1x256xf32>
    %26 = arith.addf %23, %25 : vector<1x256xf32>
    %27 = vector.extract_strided_slice %21 {offsets = [2, 0], sizes = [1, 256], strides = [1, 1]} : vector<16x256xf32> to vector<1x256xf32>
    %28 = arith.mulf %27, %17 : vector<1x256xf32>
    %29 = arith.addf %26, %28 : vector<1x256xf32>
    %30 = vector.extract_strided_slice %21 {offsets = [3, 0], sizes = [1, 256], strides = [1, 1]} : vector<16x256xf32> to vector<1x256xf32>
    %31 = arith.addf %29, %30 : vector<1x256xf32>
    %32 = vector.extract_strided_slice %21 {offsets = [4, 0], sizes = [1, 256], strides = [1, 1]} : vector<16x256xf32> to vector<1x256xf32>
    %33 = arith.mulf %32, %7 : vector<1x256xf32>
    %34 = vector.extract_strided_slice %21 {offsets = [5, 0], sizes = [1, 256], strides = [1, 1]} : vector<16x256xf32> to vector<1x256xf32>
    %35 = arith.mulf %34, %12 : vector<1x256xf32>
    %36 = arith.addf %33, %35 : vector<1x256xf32>
    %37 = vector.extract_strided_slice %21 {offsets = [6, 0], sizes = [1, 256], strides = [1, 1]} : vector<16x256xf32> to vector<1x256xf32>
    %38 = arith.mulf %37, %17 : vector<1x256xf32>
    %39 = arith.addf %36, %38 : vector<1x256xf32>
    %40 = vector.extract_strided_slice %21 {offsets = [7, 0], sizes = [1, 256], strides = [1, 1]} : vector<16x256xf32> to vector<1x256xf32>
    %41 = arith.addf %39, %40 : vector<1x256xf32>
    %42 = vector.extract_strided_slice %21 {offsets = [8, 0], sizes = [1, 256], strides = [1, 1]} : vector<16x256xf32> to vector<1x256xf32>
    %43 = arith.mulf %42, %7 : vector<1x256xf32>
    %44 = vector.extract_strided_slice %21 {offsets = [9, 0], sizes = [1, 256], strides = [1, 1]} : vector<16x256xf32> to vector<1x256xf32>
    %45 = arith.mulf %44, %12 : vector<1x256xf32>
    %46 = arith.addf %43, %45 : vector<1x256xf32>
    %47 = vector.extract_strided_slice %21 {offsets = [10, 0], sizes = [1, 256], strides = [1, 1]} : vector<16x256xf32> to vector<1x256xf32>
    %48 = arith.mulf %47, %17 : vector<1x256xf32>
    %49 = arith.addf %46, %48 : vector<1x256xf32>
    %50 = vector.extract_strided_slice %21 {offsets = [11, 0], sizes = [1, 256], strides = [1, 1]} : vector<16x256xf32> to vector<1x256xf32>
    %51 = arith.addf %49, %50 : vector<1x256xf32>
    %52 = tpu.concatenate %31, %41, %51 in 0 : vector<1x256xf32>, vector<1x256xf32>, vector<1x256xf32> -> vector<3x256xf32>
    %c0_19 = arith.constant 0 : index
    %c0_20 = arith.constant 0 : index
    %c0_21 = arith.constant 0 : index
    %53 = vector.load %arg7[%c0_19, %c0_20, %c0_21] : memref<1x3x1xf32, #tpu.memory_space<vmem>>, vector<1x3x1xf32>
    %54 = vector.shape_cast %53 : vector<1x3x1xf32> to vector<3x1xf32>
    %55 = vector.broadcast %54 : vector<3x1xf32> to vector<3x256xf32>
    %56 = arith.addf %52, %55 : vector<3x256xf32>
    %57 = vector.shape_cast %56 : vector<3x256xf32> to vector<1x3x256xf32>
    %c0_22 = arith.constant 0 : index
    %c0_23 = arith.constant 0 : index
    %c0_24 = arith.constant 0 : index
    %58 = vector.load %arg9[%c0_22, %c0_23, %c0_24] : memref<1x3x256xf32, #tpu.memory_space<vmem>>, vector<1x3x256xf32>
    tpu.vector_store %arg9[%c0_22, %c0_23, %c0_24], %57 {strides = array<i32>} : memref<1x3x256xf32, #tpu.memory_space<vmem>>, vector<1x3x256xf32>,
    %c0_i32 = arith.constant 0 : i32
    %59 = arith.cmpi eq, %arg1, %c0_i32 : i32
    %60 = arith.extui %59 : i1 to i32
    %c0_i32_25 = arith.constant 0 : i32
    %61 = arith.cmpi ne, %60, %c0_i32_25 : i32
    scf.if %61 {
      %cst_35 = arith.constant 0.000000e+00 : f32
      %68 = vector.broadcast %cst_35 : f32 to vector<1x3x19xf32>
      %c0_36 = arith.constant 0 : index
      %c0_37 = arith.constant 0 : index
      %c0_38 = arith.constant 0 : index
      %69 = vector.load %arg10[%c0_36, %c0_37, %c0_38] : memref<1x3x19xf32, #tpu.memory_space<vmem>>, vector<1x3x19xf32>
      tpu.vector_store %arg10[%c0_36, %c0_37, %c0_38], %68 {strides = array<i32>} : memref<1x3x19xf32, #tpu.memory_space<vmem>>, vector<1x3x19xf32>,
    } else {
    }
    %c0_26 = arith.constant 0 : index
    %c0_27 = arith.constant 0 : index
    %c0_28 = arith.constant 0 : index
    %62 = vector.load %arg10[%c0_26, %c0_27, %c0_28] : memref<1x3x19xf32, #tpu.memory_space<vmem>>, vector<1x3x19xf32>
    %c0_29 = arith.constant 0 : index
    %c0_30 = arith.constant 0 : index
    %63 = vector.load %arg8[%c0_29, %c0_30] : memref<256x19xf32, #tpu.memory_space<vmem>>, vector<256x19xf32>
    %cst_31 = arith.constant dense<0.000000e+00> : vector<3x19xf32>
    %64 = tpu.matmul %56, %63, %cst_31 {dimension_numbers = #tpu.dot_dimension_numbers<[1], [0], [0], [1], [0, 0, 1, 1], [], []>} : vector<3x256xf32>, vector<256x19xf32>, vector<3x19xf32> -> vector<3x19xf32>
    %65 = vector.shape_cast %64 : vector<3x19xf32> to vector<1x3x19xf32>
    %66 = arith.addf %62, %65 : vector<1x3x19xf32>
    %c0_32 = arith.constant 0 : index
    %c0_33 = arith.constant 0 : index
    %c0_34 = arith.constant 0 : index
    %67 = vector.load %arg10[%c0_32, %c0_33, %c0_34] : memref<1x3x19xf32, #tpu.memory_space<vmem>>, vector<1x3x19xf32>
    tpu.vector_store %arg10[%c0_32, %c0_33, %c0_34], %66 {strides = array<i32>} : memref<1x3x19xf32, #tpu.memory_space<vmem>>, vector<1x3x19xf32>,
    return
  }
  func.func @transform_0(%arg0: i32, %arg1: i32) -> (i32, i32, i32) {
    %c0_i32 = arith.constant 0 : i32
    %c0_i32_0 = arith.constant 0 : i32
    %c0_i32_1 = arith.constant 0 : i32
    return %arg0, %c0_i32, %c0_i32_0 : i32, i32, i32
  }
  func.func @transform_1(%arg0: i32, %arg1: i32) -> (i32, i32, i32) {
    %c0_i32 = arith.constant 0 : i32
    %c0_i32_0 = arith.constant 0 : i32
    %c0_i32_1 = arith.constant 0 : i32
    return %c0_i32, %c0_i32_0, %arg1 : i32, i32, i32
  }
  func.func @transform_2(%arg0: i32, %arg1: i32) -> (i32, i32) {
    %c0_i32 = arith.constant 0 : i32
    %c0_i32_0 = arith.constant 0 : i32
    return %c0_i32, %arg1 : i32, i32
  }
  func.func @transform_3(%arg0: i32, %arg1: i32) -> (i32, i32) {
    %c0_i32 = arith.constant 0 : i32
    %c0_i32_0 = arith.constant 0 : i32
    return %c0_i32, %arg1 : i32, i32
  }
  func.func @transform_4(%arg0: i32, %arg1: i32) -> (i32, i32, i32) {
    %c0_i32 = arith.constant 0 : i32
    %c0_i32_0 = arith.constant 0 : i32
    %c0_i32_1 = arith.constant 0 : i32
    return %arg0, %c0_i32, %c0_i32_0 : i32, i32, i32
  }
  func.func @transform_5(%arg0: i32, %arg1: i32) -> (i32, i32, i32) {
    %c0_i32 = arith.constant 0 : i32
    %c0_i32_0 = arith.constant 0 : i32
    %c0_i32_1 = arith.constant 0 : i32
    return %arg0, %c0_i32, %c0_i32_0 : i32, i32, i32
  }
  func.func @transform_6(%arg0: i32, %arg1: i32) -> (i32, i32) {
    %c0_i32 = arith.constant 0 : i32
    %c0_i32_0 = arith.constant 0 : i32
    return %arg1, %c0_i32 : i32, i32
  }
  func.func @transform_7(%arg0: i32, %arg1: i32) -> (i32, i32, i32) {
    %c0_i32 = arith.constant 0 : i32
    %c0_i32_0 = arith.constant 0 : i32
    return %arg0, %c0_i32, %arg1 : i32, i32, i32
  }
  func.func @transform_8(%arg0: i32, %arg1: i32) -> (i32, i32, i32) {
    %c0_i32 = arith.constant 0 : i32
    %c0_i32_0 = arith.constant 0 : i32
    %c0_i32_1 = arith.constant 0 : i32
    return %arg0, %c0_i32, %c0_i32_0 : i32, i32, i32
  }
}

</mosaic_0001>

<llo_original>
// kernel: _lambda_.1
$region0: #{_lambda_.1}
  #allocation0 [shape = 'u32[]', space=smem, size = 0x4, offset = 0x4, fixed_abs, tag = 'smem constant byte address 0x4 - core index']
  #allocation1 [shape = 'u32[72,128]{1,0:T(1,128)}', space=vmem, size = 0x9000, scoped, tag = 'internal scratch']
  %s0 = inlined_call_operand.vmem [shape: f32[2,1,217], index: 0, kind: input, shape index: {}]
  %s1 = inlined_call_operand.vmem [shape: f32[3,217,256], index: 1, kind: input, shape index: {}]
  %s2 = inlined_call_operand.vmem [shape: f32[3,256], index: 2, kind: input, shape index: {}]
  %s3 = inlined_call_operand.vmem [shape: f32[24,256], index: 3, kind: input, shape index: {}]
  %s4 = inlined_call_operand.vmem [shape: f32[2,16,24], index: 4, kind: input, shape index: {}]
  %s5 = inlined_call_operand.vmem [shape: f32[2,3,1], index: 5, kind: input, shape index: {}]
  %s6 = inlined_call_operand.vmem [shape: f32[256,19], index: 6, kind: input, shape index: {}]
  %s7 = inlined_call_operand.vmem [shape: f32[2,3,256], index: 7, kind: output, shape index: {0}]
  %s8 = inlined_call_operand.vmem [shape: f32[2,3,19], index: 8, kind: output, shape index: {1}]
  %9 = xla_tuple %s7, %s8
  %s10 = sld [smem:[#allocation0]]
  $region73: #{_lambda_.1} parent=0
    _
  %s12 = ssub.s32 1, %s10
  %s13 = scalar_select 0, %s12, %s10
  loop: start=0, step=1, limit=4
  $region2: #{_lambda_.1} parent=0 // loop_pre_header
    _
  $region3: #{_lambda_.1} parent=0 // loop_header
    %s15 = sphi 0, %s19
    %p16 = scmp.ge.s32.totalorder %s15, 4
    %s22 = sphi 0, %s34
    %s23 = sphi 0, %s30
    %s24 = sphi 0, %s22
    %s25 = sphi 0, %s23
    %s26 = sphi 0, %s24
    %s27 = sphi 0, %s25
    %s37 = sphi 0, %s39
    %s40 = sphi 0, %s37
    %s41 = sphi 0, %s40
    %s57 = sphi 0, %s41
    %s63 = sphi 0, %s65
    %s66 = sphi 0, %s63
    %s67 = sphi 0, %s66
    %s83 = sphi 0, %s67
    %s89 = sphi 0, %s91
    %s92 = sphi 0, %s89
    %s93 = sphi 0, %s92
    %s109 = sphi 0, %s93
    %s115 = sphi 0, %s117
    %s118 = sphi 0, %s115
    %s119 = sphi 0, %s118
    %s135 = sphi 0, %s119
    %s141 = sphi 0, %s143
    %s144 = sphi 0, %s141
    %s145 = sphi 0, %s144
    %s161 = sphi 0, %s145
    %s167 = sphi 0, %s169
    %s170 = sphi 0, %s167
    %s171 = sphi 0, %s170
    %s187 = sphi 0, %s171
    %s193 = sphi 0, %s195
    %s196 = sphi 0, %s193
    %s197 = sphi 0, %s196
    %s213 = sphi 0, %s197
    %s221 = sphi 0, %s223
    %s224 = sphi 0, %s221
    %s225 = sphi 0, %s224
    %s241 = sphi 0, %s225
    %s247 = sphi 0, %s249
    %s250 = sphi 0, %s247
    %s251 = sphi 0, %s250
    %s267 = sphi 0, %s251
  $region4: #{_lambda_.1} parent=0 // loop_header_branch
    %18 = sbr.rel (%p16) target = $region8
  $region5: #{_lambda_.1} parent=0 // loop_body
    %s20 = ssub.s32 %s15, 1
    %s21 = ssub.s32 %s15, 2
    %s28 = sadd.s32 1, %s23
    %p29 = scmp.ge.s32.totalorder %s28, 1
    %s30 = scalar_select %p29, 0, %s28
    %s31 = sadd.s32 1, %s22
    %s32 = scalar_select %p29, %s31, %s22
    %p33 = scmp.ge.s32.totalorder %s32, 2
    %s34 = scalar_select %p33, 0, %s32
    %s35 = ssub.s32 %s22, %s34
    %p36 = scmp.eq.s32.totalorder %s35, 0
    %s38 = sadd.s32 %s37, 1
    %s39 = scalar_select %p36, %s37, %s38
    %p42 = pneg %p36
    %p43 = scmp.eq.s32.totalorder %s15, 1
    %p44 = por %p42, %p43
    %p45 = scmp.ne.s32.totalorder %s37, %s40
    %p46 = scmp.eq.s32.totalorder %s15, 0
    %p47 = por %p45, %p46
    %p48 = scmp.ne.s32.totalorder %s37, %s40
    %p49 = scmp.eq.s32.totalorder %s20, 1
    %p50 = por %p48, %p49
    %p51 = scmp.ne.s32.totalorder %s40, %s41
    %p52 = scmp.eq.s32.totalorder %s20, 0
    %p53 = por %p51, %p52
    %p54 = scmp.ne.s32.totalorder %s40, %s41
    %p55 = scmp.eq.s32.totalorder %s21, 1
    %p56 = por %p54, %p55
    %p58 = scmp.ne.s32.totalorder %s41, %s57
    %p59 = scmp.eq.s32.totalorder %s21, 0
    %p60 = por %p58, %p59
    %s61 = ssub.s32 %s23, %s30
    %p62 = scmp.eq.s32.totalorder %s61, 0
    %s64 = sadd.s32 %s63, 1
    %s65 = scalar_select %p62, %s63, %s64
    %p68 = pneg %p62
    %p69 = scmp.eq.s32.totalorder %s15, 1
    %p70 = por %p68, %p69
    %p71 = scmp.ne.s32.totalorder %s63, %s66
    %p72 = scmp.eq.s32.totalorder %s15, 0
    %p73 = por %p71, %p72
    %p74 = scmp.ne.s32.totalorder %s63, %s66
    %p75 = scmp.eq.s32.totalorder %s20, 1
    %p76 = por %p74, %p75
    %p77 = scmp.ne.s32.totalorder %s66, %s67
    %p78 = scmp.eq.s32.totalorder %s20, 0
    %p79 = por %p77, %p78
    %p80 = scmp.ne.s32.totalorder %s66, %s67
    %p81 = scmp.eq.s32.totalorder %s21, 1
    %p82 = por %p80, %p81
    %p84 = scmp.ne.s32.totalorder %s67, %s83
    %p85 = scmp.eq.s32.totalorder %s21, 0
    %p86 = por %p84, %p85
    %s87 = ssub.s32 %s23, %s30
    %p88 = scmp.eq.s32.totalorder %s87, 0
    %s90 = sadd.s32 %s89, 1
    %s91 = scalar_select %p88, %s89, %s90
    %p94 = pneg %p88
    %p95 = scmp.eq.s32.totalorder %s15, 1
    %p96 = por %p94, %p95
    %p97 = scmp.ne.s32.totalorder %s89, %s92
    %p98 = scmp.eq.s32.totalorder %s15, 0
    %p99 = por %p97, %p98
    %p100 = scmp.ne.s32.totalorder %s89, %s92
    %p101 = scmp.eq.s32.totalorder %s20, 1
    %p102 = por %p100, %p101
    %p103 = scmp.ne.s32.totalorder %s92, %s93
    %p104 = scmp.eq.s32.totalorder %s20, 0
    %p105 = por %p103, %p104
    %p106 = scmp.ne.s32.totalorder %s92, %s93
    %p107 = scmp.eq.s32.totalorder %s21, 1
    %p108 = por %p106, %p107
    %p110 = scmp.ne.s32.totalorder %s93, %s109
    %p111 = scmp.eq.s32.totalorder %s21, 0
    %p112 = por %p110, %p111
    %s113 = ssub.s32 %s23, %s30
    %p114 = scmp.eq.s32.totalorder %s113, 0
    %s116 = sadd.s32 %s115, 1
    %s117 = scalar_select %p114, %s115, %s116
    %p120 = pneg %p114
    %p121 = scmp.eq.s32.totalorder %s15, 1
    %p122 = por %p120, %p121
    %p123 = scmp.ne.s32.totalorder %s115, %s118
    %p124 = scmp.eq.s32.totalorder %s15, 0
    %p125 = por %p123, %p124
    %p126 = scmp.ne.s32.totalorder %s115, %s118
    %p127 = scmp.eq.s32.totalorder %s20, 1
    %p128 = por %p126, %p127
    %p129 = scmp.ne.s32.totalorder %s118, %s119
    %p130 = scmp.eq.s32.totalorder %s20, 0
    %p131 = por %p129, %p130
    %p132 = scmp.ne.s32.totalorder %s118, %s119
    %p133 = scmp.eq.s32.totalorder %s21, 1
    %p134 = por %p132, %p133
    %p136 = scmp.ne.s32.totalorder %s119, %s135
    %p137 = scmp.eq.s32.totalorder %s21, 0
    %p138 = por %p136, %p137
    %s139 = ssub.s32 %s22, %s34
    %p140 = scmp.eq.s32.totalorder %s139, 0
    %s142 = sadd.s32 %s141, 1
    %s143 = scalar_select %p140, %s141, %s142
    %p146 = pneg %p140
    %p147 = scmp.eq.s32.totalorder %s15, 1
    %p148 = por %p146, %p147
    %p149 = scmp.ne.s32.totalorder %s141, %s144
    %p150 = scmp.eq.s32.totalorder %s15, 0
    %p151 = por %p149, %p150
    %p152 = scmp.ne.s32.totalorder %s141, %s144
    %p153 = scmp.eq.s32.totalorder %s20, 1
    %p154 = por %p152, %p153
    %p155 = scmp.ne.s32.totalorder %s144, %s145
    %p156 = scmp.eq.s32.totalorder %s20, 0
    %p157 = por %p155, %p156
    %p158 = scmp.ne.s32.totalorder %s144, %s145
    %p159 = scmp.eq.s32.totalorder %s21, 1
    %p160 = por %p158, %p159
    %p162 = scmp.ne.s32.totalorder %s145, %s161
    %p163 = scmp.eq.s32.totalorder %s21, 0
    %p164 = por %p162, %p163
    %s165 = ssub.s32 %s22, %s34
    %p166 = scmp.eq.s32.totalorder %s165, 0
    %s168 = sadd.s32 %s167, 1
    %s169 = scalar_select %p166, %s167, %s168
    %p172 = pneg %p166
    %p173 = scmp.eq.s32.totalorder %s15, 1
    %p174 = por %p172, %p173
    %p175 = scmp.ne.s32.totalorder %s167, %s170
    %p176 = scmp.eq.s32.totalorder %s15, 0
    %p177 = por %p175, %p176
    %p178 = scmp.ne.s32.totalorder %s167, %s170
    %p179 = scmp.eq.s32.totalorder %s20, 1
    %p180 = por %p178, %p179
    %p181 = scmp.ne.s32.totalorder %s170, %s171
    %p182 = scmp.eq.s32.totalorder %s20, 0
    %p183 = por %p181, %p182
    %p184 = scmp.ne.s32.totalorder %s170, %s171
    %p185 = scmp.eq.s32.totalorder %s21, 1
    %p186 = por %p184, %p185
    %p188 = scmp.ne.s32.totalorder %s171, %s187
    %p189 = scmp.eq.s32.totalorder %s21, 0
    %p190 = por %p188, %p189
    %s191 = ssub.s32 %s23, %s30
    %p192 = scmp.eq.s32.totalorder %s191, 0
    %s194 = sadd.s32 %s193, 1
    %s195 = scalar_select %p192, %s193, %s194
    %p198 = pneg %p192
    %p199 = scmp.eq.s32.totalorder %s15, 1
    %p200 = por %p198, %p199
    %p201 = scmp.ne.s32.totalorder %s193, %s196
    %p202 = scmp.eq.s32.totalorder %s15, 0
    %p203 = por %p201, %p202
    %p204 = scmp.ne.s32.totalorder %s193, %s196
    %p205 = scmp.eq.s32.totalorder %s20, 1
    %p206 = por %p204, %p205
    %p207 = scmp.ne.s32.totalorder %s196, %s197
    %p208 = scmp.eq.s32.totalorder %s20, 0
    %p209 = por %p207, %p208
    %p210 = scmp.ne.s32.totalorder %s196, %s197
    %p211 = scmp.eq.s32.totalorder %s21, 1
    %p212 = por %p210, %p211
    %p214 = scmp.ne.s32.totalorder %s197, %s213
    %p215 = scmp.eq.s32.totalorder %s21, 0
    %p216 = por %p214, %p215
    %s217 = ssub.s32 %s22, %s34
    %s218 = ssub.s32 %s23, %s30
    %s219 = sor.u32 %s217, %s218
    %p220 = scmp.eq.s32.totalorder %s219, 0
    %s222 = sadd.s32 %s221, 1
    %s223 = scalar_select %p220, %s221, %s222
    %p226 = pneg %p220
    %p227 = scmp.eq.s32.totalorder %s15, 1
    %p228 = por %p226, %p227
    %p229 = scmp.ne.s32.totalorder %s221, %s224
    %p230 = scmp.eq.s32.totalorder %s15, 0
    %p231 = por %p229, %p230
    %p232 = scmp.ne.s32.totalorder %s221, %s224
    %p233 = scmp.eq.s32.totalorder %s20, 1
    %p234 = por %p232, %p233
    %p235 = scmp.ne.s32.totalorder %s224, %s225
    %p236 = scmp.eq.s32.totalorder %s20, 0
    %p237 = por %p235, %p236
    %p238 = scmp.ne.s32.totalorder %s224, %s225
    %p239 = scmp.eq.s32.totalorder %s21, 1
    %p240 = por %p238, %p239
    %p242 = scmp.ne.s32.totalorder %s225, %s241
    %p243 = scmp.eq.s32.totalorder %s21, 0
    %p244 = por %p242, %p243
    %s245 = ssub.s32 %s22, %s34
    %p246 = scmp.eq.s32.totalorder %s245, 0
    %s248 = sadd.s32 %s247, 1
    %s249 = scalar_select %p246, %s247, %s248
    %p252 = pneg %p246
    %p253 = scmp.eq.s32.totalorder %s15, 1
    %p254 = por %p252, %p253
    %p255 = scmp.ne.s32.totalorder %s247, %s250
    %p256 = scmp.eq.s32.totalorder %s15, 0
    %p257 = por %p255, %p256
    %p258 = scmp.ne.s32.totalorder %s247, %s250
    %p259 = scmp.eq.s32.totalorder %s20, 1
    %p260 = por %p258, %p259
    %p261 = scmp.ne.s32.totalorder %s250, %s251
    %p262 = scmp.eq.s32.totalorder %s20, 0
    %p263 = por %p261, %p262
    %p264 = scmp.ne.s32.totalorder %s250, %s251
    %p265 = scmp.eq.s32.totalorder %s21, 1
    %p266 = por %p264, %p265
    %p268 = scmp.ne.s32.totalorder %s251, %s267
    %p269 = scmp.eq.s32.totalorder %s21, 0
    %p270 = por %p268, %p269
    %p271 = scmp.le.s32.totalorder 1, %s15
    %p272 = scmp.lt.s32.totalorder %s15, 3
    %p273 = pnand %p271, %p272
    %p274 = pneg %p273
    // Predicated region
    $region9: #{_lambda_.1} parent=5 // pred_check
      _
    $region10: #{_lambda_.1} parent=5 // pred_check_branch
      %276 = sbr.rel (%p273) target = $region12
    $region11: #{_lambda_.1} parent=5 // pred_region
      %s277 = ssub.s32 %s15, 1
      // Predicated region
      $region13: #{_lambda_.1} parent=11 // pred_check
        %p278 = pneg %p79
      $region14: #{_lambda_.1} parent=11 // pred_check_branch
        %280 = sbr.rel (%p278) target = $region16
      $region15: #{_lambda_.1} parent=11 // pred_region
        %s281 = smul.u32 2, %s25
        %p282 = scmp.lt.s32.totalorder %s281, 1
        %s283 = scalar_select %p282, %s281, 1
        %s284 = smul.addr %s283, 8
        %s285 = scalar_lea.vmem %s1, %s284
        %s286 = smul.u32 2, %s25
      $region16: #{_lambda_.1} parent=11 // pred_fallthru
        _
      // Predicated region
      $region17: #{_lambda_.1} parent=11 // pred_check
        %p287 = pneg %p105
      $region18: #{_lambda_.1} parent=11 // pred_check_branch
        %289 = sbr.rel (%p287) target = $region20
      $region19: #{_lambda_.1} parent=11 // pred_region
        %s290 = smul.u32 2, %s25
        %p291 = scmp.lt.s32.totalorder %s290, 1
        %s292 = scalar_select %p291, %s290, 1
        %s293 = smul.addr %s292, 4
        %s294 = scalar_lea.vmem %s2, %s293
        %s295 = smul.u32 2, %s25
      $region20: #{_lambda_.1} parent=11 // pred_fallthru
        _
      // Predicated region
      $region21: #{_lambda_.1} parent=11 // pred_check
        %p296 = pneg %p131
      $region22: #{_lambda_.1} parent=11 // pred_check_branch
        %298 = sbr.rel (%p296) target = $region24
      $region23: #{_lambda_.1} parent=11 // pred_region
        %s299 = smul.u32 2, %s25
        %p300 = scmp.lt.s32.totalorder %s299, 1
        %s301 = scalar_select %p300, %s299, 1
        %s302 = smul.addr %s301, 8
        %s303 = scalar_lea.vmem %s3, %s302
        %s304 = smul.u32 2, %s25
      $region24: #{_lambda_.1} parent=11 // pred_fallthru
        _
      // Predicated region
      $region25: #{_lambda_.1} parent=11 // pred_check
        %p305 = pneg %p209
      $region26: #{_lambda_.1} parent=11 // pred_check_branch
        %307 = sbr.rel (%p305) target = $region28
      $region27: #{_lambda_.1} parent=11 // pred_region
        %s308 = smul.u32 32, %s25
        %p309 = scmp.lt.s32.totalorder %s308, 31
        %s310 = scalar_select %p309, %s308, 31
        %s311 = smul.addr %s310, 8
        %s312 = scalar_lea.vmem %s6, %s311
        %s313 = smul.u32 32, %s25
      $region28: #{_lambda_.1} parent=11 // pred_fallthru
        _
    $region12: #{_lambda_.1} parent=5 // pred_fallthru
      _
    %p314 = scmp.lt.s32.totalorder %s15, 2
    // Predicated region
    $region29: #{_lambda_.1} parent=5 // pred_check
      %p315 = pneg %p314
    $region30: #{_lambda_.1} parent=5 // pred_check_branch
      %317 = sbr.rel (%p315) target = $region32
    $region31: #{_lambda_.1} parent=5 // pred_region
      // Predicated region
      $region33: #{_lambda_.1} parent=31 // pred_check
        %p318 = pneg %p47
      $region34: #{_lambda_.1} parent=31 // pred_check_branch
        %320 = sbr.rel (%p318) target = $region36
      $region35: #{_lambda_.1} parent=31 // pred_region
        %p321 = scmp.lt.s32.totalorder %s22, 1
        %s322 = scalar_select %p321, %s22, 1
        %s323 = smul.addr %s322, 2
        %s324 = scalar_lea.vmem %s0, %s323
      $region36: #{_lambda_.1} parent=31 // pred_fallthru
        _
      // Predicated region
      $region37: #{_lambda_.1} parent=31 // pred_check
        %p325 = pneg %p151
      $region38: #{_lambda_.1} parent=31 // pred_check_branch
        %327 = sbr.rel (%p325) target = $region40
      $region39: #{_lambda_.1} parent=31 // pred_region
        %p328 = scmp.lt.s32.totalorder %s22, 1
        %s329 = scalar_select %p328, %s22, 1
        %s330 = smul.addr %s329, 2
        %s331 = smul.addr %s330, 8
        %s332 = scalar_lea.vmem %s4, %s331
      $region40: #{_lambda_.1} parent=31 // pred_fallthru
        _
      // Predicated region
      $region41: #{_lambda_.1} parent=31 // pred_check
        %p333 = pneg %p177
      $region42: #{_lambda_.1} parent=31 // pred_check_branch
        %335 = sbr.rel (%p333) target = $region44
      $region43: #{_lambda_.1} parent=31 // pred_region
        %p336 = scmp.lt.s32.totalorder %s22, 1
        %s337 = scalar_select %p336, %s22, 1
        %s338 = smul.addr %s337, 4
        %s339 = scalar_lea.vmem %s5, %s338
      $region44: #{_lambda_.1} parent=31 // pred_fallthru
        _
    $region32: #{_lambda_.1} parent=5 // pred_fallthru
      _
    %p340 = scmp.le.s32.totalorder 1, %s15
    %p341 = scmp.lt.s32.totalorder %s15, 3
    %p342 = pnand %p340, %p341
    %p343 = pneg %p342
    // Predicated region
    $region45: #{_lambda_.1} parent=5 // pred_check
      _
    $region46: #{_lambda_.1} parent=5 // pred_check_branch
      %345 = sbr.rel (%p342) target = $region48
    $region47: #{_lambda_.1} parent=5 // pred_region
      %s346 = ssub.s32 %s15, 1
      %p347 = scmp.lt.s32.totalorder %s24, 1
      %s348 = scalar_select %p347, %s24, 1
      %s349 = smul.addr %s348, 2
      %s350 = scalar_lea.vmem %s0, %s349
      %p351 = pneg %p53
      %p352 = pneg %p50
      %s353 = smul.u32 2, %s25
      %p354 = scmp.lt.s32.totalorder %s353, 1
      %s355 = scalar_select %p354, %s353, 1
      %s356 = smul.addr %s355, 8
      %s357 = scalar_lea.vmem %s1, %s356
      %p358 = pneg %p79
      %p359 = pneg %p76
      %s360 = smul.u32 2, %s25
      %p361 = scmp.lt.s32.totalorder %s360, 1
      %s362 = scalar_select %p361, %s360, 1
      %s363 = smul.addr %s362, 4
      %s364 = scalar_lea.vmem %s2, %s363
      %p365 = pneg %p105
      %p366 = pneg %p102
      %s367 = smul.u32 2, %s25
      %p368 = scmp.lt.s32.totalorder %s367, 1
      %s369 = scalar_select %p368, %s367, 1
      %s370 = smul.addr %s369, 8
      %s371 = scalar_lea.vmem %s3, %s370
      %p372 = pneg %p131
      %p373 = pneg %p128
      %p374 = scmp.lt.s32.totalorder %s24, 1
      %s375 = scalar_select %p374, %s24, 1
      %s376 = smul.addr %s375, 2
      %s377 = smul.addr %s376, 8
      %s378 = scalar_lea.vmem %s4, %s377
      %p379 = pneg %p157
      %p380 = pneg %p154
      %p381 = scmp.lt.s32.totalorder %s24, 1
      %s382 = scalar_select %p381, %s24, 1
      %s383 = smul.addr %s382, 4
      %s384 = scalar_lea.vmem %s5, %s383
      %p385 = pneg %p183
      %p386 = pneg %p180
      %s387 = smul.u32 32, %s25
      %p388 = scmp.lt.s32.totalorder %s387, 31
      %s389 = scalar_select %p388, %s387, 31
      %s390 = smul.addr %s389, 8
      %s391 = scalar_lea.vmem %s6, %s390
      %p392 = pneg %p209
      %p393 = pneg %p206
      %p394 = pneg %p237
      %p395 = pneg %p234
      %s396 = smul.u32 2, %s25
      %p397 = scmp.lt.s32.totalorder %s24, 1
      %s398 = scalar_select %p397, %s24, 1
      %p399 = scmp.lt.s32.totalorder %s396, 1
      %s400 = scalar_select %p399, %s396, 1
      %s401 = smul.addr %s398, 2
      %s402 = sadd.s32 %s400, %s401
      %s403 = smul.addr %s402, 4
      %s404 = scalar_lea.vmem %s7, %s403
      %p405 = pneg %p263
      %p406 = pneg %p260
      %p407 = scmp.lt.s32.totalorder %s24, 1
      %s408 = scalar_select %p407, %s24, 1
      %s409 = smul.addr %s408, 4
      %s410 = scalar_lea.vmem %s8, %s409
      %p411 = scmp.lt.s32.totalorder %s24, 1
      %s412 = scalar_select %p411, %s24, 1
      %s413 = smul.addr %s412, 2
      %s414 = scalar_lea.vmem %s0, %s413
      %s415 = smul.u32 2, %s25
      %p416 = scmp.lt.s32.totalorder %s415, 1
      %s417 = scalar_select %p416, %s415, 1
      %s418 = smul.addr %s417, 8
      %s419 = scalar_lea.vmem %s1, %s418
      %s420 = smul.u32 2, %s25
      %s421 = smul.u32 2, %s25
      %p422 = scmp.lt.s32.totalorder %s421, 1
      %s423 = scalar_select %p422, %s421, 1
      %s424 = smul.addr %s423, 4
      %s425 = scalar_lea.vmem %s2, %s424
      %s426 = smul.u32 2, %s25
      %s427 = smul.u32 2, %s25
      %p428 = scmp.lt.s32.totalorder %s427, 1
      %s429 = scalar_select %p428, %s427, 1
      %s430 = smul.addr %s429, 8
      %s431 = scalar_lea.vmem %s3, %s430
      %s432 = smul.u32 2, %s25
      %p433 = scmp.lt.s32.totalorder %s24, 1
      %s434 = scalar_select %p433, %s24, 1
      %s435 = smul.addr %s434, 2
      %s436 = smul.addr %s435, 8
      %s437 = scalar_lea.vmem %s4, %s436
      %p438 = scmp.lt.s32.totalorder %s24, 1
      %s439 = scalar_select %p438, %s24, 1
      %s440 = smul.addr %s439, 4
      %s441 = scalar_lea.vmem %s5, %s440
      %s442 = smul.u32 32, %s25
      %p443 = scmp.lt.s32.totalorder %s442, 31
      %s444 = scalar_select %p443, %s442, 31
      %s445 = smul.addr %s444, 8
      %s446 = scalar_lea.vmem %s6, %s445
      %s447 = smul.u32 32, %s25
      %s448 = smul.u32 2, %s25
      %p449 = scmp.lt.s32.totalorder %s24, 1
      %s450 = scalar_select %p449, %s24, 1
      %p451 = scmp.lt.s32.totalorder %s448, 1
      %s452 = scalar_select %p451, %s448, 1
      %s453 = smul.addr %s450, 2
      %s454 = sadd.s32 %s452, %s453
      %s455 = smul.addr %s454, 4
      %s456 = scalar_lea.vmem %s7, %s455
      %s457 = smul.u32 2, %s25
      %p458 = scmp.lt.s32.totalorder %s24, 1
      %s459 = scalar_select %p458, %s24, 1
      %s460 = smul.addr %s459, 4
      %s461 = scalar_lea.vmem %s8, %s460
      %v462 = vld [vmem:[%s414] sm:$0x3]
      %v463 = vld [vmem:[%s425] sm:$0x77]
      %v464 = vld [vmem:[%s419] sm:$0xff]
      %v465 = vld [vmem:[%s419 + $0x8] sm:$0xff]
      %v466 = vld [vmem:[%s419 + $0x10] sm:$0xff]
      %v467 = vld [vmem:[%s419 + $0x18] sm:$0xff]
      %v468 = vld [vmem:[%s419 + $0x20] sm:$0xff]
      %v469 = vld [vmem:[%s419 + $0x28] sm:$0xff]
      %v470 = vld [vmem:[%s419 + $0x30] sm:$0xff]
      %v471 = vld [vmem:[%s419 + $0x38] sm:$0xff]
      %v472 = vld [vmem:[%s419 + $0x40] sm:$0xff]
      %v473 = vld [vmem:[%s419 + $0x48] sm:$0xff]
      %v474 = vld [vmem:[%s419 + $0x50] sm:$0xff]
      %v475 = vld [vmem:[%s419 + $0x58] sm:$0xff]
      %v476 = vld [vmem:[%s419 + $0x60] sm:$0xff]
      %v477 = vld [vmem:[%s419 + $0x68] sm:$0xff]
      %v478 = vld [vmem:[%s419 + $0x70] sm:$0xff]
      %v479 = vld [vmem:[%s419 + $0x78] sm:$0xff]
      %v480 = vld [vmem:[%s419 + $0x80] sm:$0xff]
      %v481 = vld [vmem:[%s419 + $0x88] sm:$0xff]
      %v482 = vld [vmem:[%s419 + $0x90] sm:$0xff]
      %v483 = vld [vmem:[%s419 + $0x98] sm:$0xff]
      %v484 = vld [vmem:[%s419 + $0xa0] sm:$0xff]
      %v485 = vld [vmem:[%s419 + $0xa8] sm:$0xff]
      %v486 = vld [vmem:[%s419 + $0xb0] sm:$0xff]
      %v487 = vld [vmem:[%s419 + $0xb8] sm:$0xff]
      %v488 = vld [vmem:[%s419 + $0xc0] sm:$0xff]
      %v489 = vld [vmem:[%s419 + $0xc8] sm:$0xff]
      %v490 = vld [vmem:[%s419 + $0xd0] sm:$0xff]
      %v491 = vld [vmem:[%s419 + $0xd8] sm:$0xff]
      %v492 = vld [vmem:[%s419 + $0xe0] sm:$0xff]
      %v493 = vld [vmem:[%s419 + $0xe8] sm:$0xff]
      %v494 = vld [vmem:[%s419 + $0xf0] sm:$0xff]
      %v495 = vld [vmem:[%s419 + $0xf8] sm:$0xff]
      %v496 = vld [vmem:[%s419 + $0x100] sm:$0xff]
      %v497 = vld [vmem:[%s419 + $0x108] sm:$0xff]
      %v498 = vld [vmem:[%s419 + $0x110] sm:$0xff]
      %v499 = vld [vmem:[%s419 + $0x118] sm:$0xff]
      %v500 = vld [vmem:[%s419 + $0x120] sm:$0xff]
      %v501 = vld [vmem:[%s419 + $0x128] sm:$0xff]
      %v502 = vld [vmem:[%s419 + $0x130] sm:$0xff]
      %v503 = vld [vmem:[%s419 + $0x138] sm:$0xff]
      %v504 = vld [vmem:[%s419 + $0x140] sm:$0xff]
      %v505 = vld [vmem:[%s419 + $0x148] sm:$0xff]
      %v506 = vld [vmem:[%s419 + $0x150] sm:$0xff]
      %v507 = vld [vmem:[%s419 + $0x158] sm:$0xff]
      %v508 = vld [vmem:[%s419 + $0x160] sm:$0xff]
      %v509 = vld [vmem:[%s419 + $0x168] sm:$0xff]
      %v510 = vld [vmem:[%s419 + $0x170] sm:$0xff]
      %v511 = vld [vmem:[%s419 + $0x178] sm:$0xff]
      %v512 = vld [vmem:[%s419 + $0x180] sm:$0xff]
      %v513 = vld [vmem:[%s419 + $0x188] sm:$0xff]
      %v514 = vld [vmem:[%s419 + $0x190] sm:$0xff]
      %v515 = vld [vmem:[%s419 + $0x198] sm:$0xff]
      %v516 = vld [vmem:[%s419 + $0x1a0] sm:$0xff]
      %v517 = vld [vmem:[%s419 + $0x1a8] sm:$0xff]
      %v518 = vld [vmem:[%s419 + $0x1b0] sm:$0x1]
      %v519 = vld [vmem:[%s419 + $0x1b8] sm:$0x1]
      %v521 = vperm.slane %v462, 0
      %v522 = vperm.slane %v462, 1
      %v525 = vperm.slane %v463, 0
      %v526 = vperm.slane %v463, 4
      %vm529 = vcmask 728064
      %v530 = vsel %vm529, %v522, 0
      %vm532 = vcmask 1040384
      %v534 = vsel %vm532, %v518, 0
      %v537 = vsel %vm532, %v519, 0
      %539 = vmatpush.msra.mxu0 %v494
      %540 = vmatpush.msra.mxu0 %v492
      %541 = vmatpush.msra.mxu0 %v490
      %542 = vmatpush.msra.mxu0 %v488
      %543 = vmatpush.msra.mxu0 %v486
      %544 = vmatpush.msra.mxu0 %v484
      %545 = vmatpush.msra.mxu0 %v482
      %546 = vmatpush.msra.mxu0 %v480
      %547 = vmatpush.msra.mxu0 %v478
      %548 = vmatpush.msra.mxu0 %v476
      %549 = vmatpush.msra.mxu0 %v474
      %550 = vmatpush.msra.mxu0 %v472
      %551 = vmatpush.msra.mxu0 %v470
      %552 = vmatpush.msra.mxu0 %v468
      %553 = vmatpush.msra.mxu0 %v466
      %554 = vmatpush.msra.mxu0 %v464
      %555 = vmatmul.f32.gmra.mxu0 %v521
      %v556 = vpop.f32.mrf.mxu0
      %v557 = vadd.f32 %v525, %v556
      %558 = vdwg.mxu0
      %559 = vmatpush.msra.mxu0 0.0
      %560 = vmatpush.msra.mxu0 0.0
      %561 = vmatpush.msra.mxu0 0.0
      %562 = vmatpush.msra.mxu0 0.0
      %563 = vmatpush.msra.mxu0 %v534
      %564 = vmatpush.msra.mxu0 %v516
      %565 = vmatpush.msra.mxu0 %v514
      %566 = vmatpush.msra.mxu0 %v512
      %567 = vmatpush.msra.mxu0 %v510
      %568 = vmatpush.msra.mxu0 %v508
      %569 = vmatpush.msra.mxu0 %v506
      %570 = vmatpush.msra.mxu0 %v504
      %571 = vmatpush.msra.mxu0 %v502
      %572 = vmatpush.msra.mxu0 %v500
      %573 = vmatpush.msra.mxu0 %v498
      %574 = vmatpush.msra.mxu0 %v496
      %575 = vmatmul.f32.gmra.mxu0 %v530
      %v576 = vpop.f32.mrf.mxu0
      %v577 = vadd.f32 %v557, %v576
      %578 = vdwg.mxu0
      %579 = vmatpush.msra.mxu0 %v495
      %580 = vmatpush.msra.mxu0 %v493
      %581 = vmatpush.msra.mxu0 %v491
      %582 = vmatpush.msra.mxu0 %v489
      %583 = vmatpush.msra.mxu0 %v487
      %584 = vmatpush.msra.mxu0 %v485
      %585 = vmatpush.msra.mxu0 %v483
      %586 = vmatpush.msra.mxu0 %v481
      %587 = vmatpush.msra.mxu0 %v479
      %588 = vmatpush.msra.mxu0 %v477
      %589 = vmatpush.msra.mxu0 %v475
      %590 = vmatpush.msra.mxu0 %v473
      %591 = vmatpush.msra.mxu0 %v471
      %592 = vmatpush.msra.mxu0 %v469
      %593 = vmatpush.msra.mxu0 %v467
      %594 = vmatpush.msra.mxu0 %v465
      %595 = vmatmul.f32.gmra.mxu0 %v521
      %v596 = vpop.f32.mrf.mxu0
      %v597 = vadd.f32 %v526, %v596
      %598 = vdwg.mxu0
      %599 = vmatpush.msra.mxu0 0.0
      %600 = vmatpush.msra.mxu0 0.0
      %601 = vmatpush.msra.mxu0 0.0
      %602 = vmatpush.msra.mxu0 0.0
      %603 = vmatpush.msra.mxu0 %v537
      %604 = vmatpush.msra.mxu0 %v517
      %605 = vmatpush.msra.mxu0 %v515
      %606 = vmatpush.msra.mxu0 %v513
      %607 = vmatpush.msra.mxu0 %v511
      %608 = vmatpush.msra.mxu0 %v509
      %609 = vmatpush.msra.mxu0 %v507
      %610 = vmatpush.msra.mxu0 %v505
      %611 = vmatpush.msra.mxu0 %v503
      %612 = vmatpush.msra.mxu0 %v501
      %613 = vmatpush.msra.mxu0 %v499
      %614 = vmatpush.msra.mxu0 %v497
      %615 = vmatmul.f32.gmra.mxu0 %v530
      %v616 = vpop.f32.mrf.mxu0
      %v617 = vadd.f32 %v597, %v616
      %618 = vdwg.mxu0
      %s619 = scalar_lea.vmem %s419, 448
      %v620 = vld [vmem:[%s619] sm:$0xff]
      %v621 = vld [vmem:[%s619 + $0x8] sm:$0xff]
      %v622 = vld [vmem:[%s619 + $0x10] sm:$0xff]
      %v623 = vld [vmem:[%s619 + $0x18] sm:$0xff]
      %v624 = vld [vmem:[%s619 + $0x20] sm:$0xff]
      %v625 = vld [vmem:[%s619 + $0x28] sm:$0xff]
      %v626 = vld [vmem:[%s619 + $0x30] sm:$0xff]
      %v627 = vld [vmem:[%s619 + $0x38] sm:$0xff]
      %v628 = vld [vmem:[%s619 + $0x40] sm:$0xff]
      %v629 = vld [vmem:[%s619 + $0x48] sm:$0xff]
      %v630 = vld [vmem:[%s619 + $0x50] sm:$0xff]
      %v631 = vld [vmem:[%s619 + $0x58] sm:$0xff]
      %v632 = vld [vmem:[%s619 + $0x60] sm:$0xff]
      %v633 = vld [vmem:[%s619 + $0x68] sm:$0xff]
      %v634 = vld [vmem:[%s619 + $0x70] sm:$0xff]
      %v635 = vld [vmem:[%s619 + $0x78] sm:$0xff]
      %v636 = vld [vmem:[%s619 + $0x80] sm:$0xff]
      %v637 = vld [vmem:[%s619 + $0x88] sm:$0xff]
      %v638 = vld [vmem:[%s619 + $0x90] sm:$0xff]
      %v639 = vld [vmem:[%s619 + $0x98] sm:$0xff]
      %v640 = vld [vmem:[%s619 + $0xa0] sm:$0xff]
      %v641 = vld [vmem:[%s619 + $0xa8] sm:$0xff]
      %v642 = vld [vmem:[%s619 + $0xb0] sm:$0xff]
      %v643 = vld [vmem:[%s619 + $0xb8] sm:$0xff]
      %v644 = vld [vmem:[%s619 + $0xc0] sm:$0xff]
      %v645 = vld [vmem:[%s619 + $0xc8] sm:$0xff]
      %v646 = vld [vmem:[%s619 + $0xd0] sm:$0xff]
      %v647 = vld [vmem:[%s619 + $0xd8] sm:$0xff]
      %v648 = vld [vmem:[%s619 + $0xe0] sm:$0xff]
      %v649 = vld [vmem:[%s619 + $0xe8] sm:$0xff]
      %v650 = vld [vmem:[%s619 + $0xf0] sm:$0xff]
      %v651 = vld [vmem:[%s619 + $0xf8] sm:$0xff]
      %v652 = vld [vmem:[%s619 + $0x100] sm:$0xff]
      %v653 = vld [vmem:[%s619 + $0x108] sm:$0xff]
      %v654 = vld [vmem:[%s619 + $0x110] sm:$0xff]
      %v655 = vld [vmem:[%s619 + $0x118] sm:$0xff]
      %v656 = vld [vmem:[%s619 + $0x120] sm:$0xff]
      %v657 = vld [vmem:[%s619 + $0x128] sm:$0xff]
      %v658 = vld [vmem:[%s619 + $0x130] sm:$0xff]
      %v659 = vld [vmem:[%s619 + $0x138] sm:$0xff]
      %v660 = vld [vmem:[%s619 + $0x140] sm:$0xff]
      %v661 = vld [vmem:[%s619 + $0x148] sm:$0xff]
      %v662 = vld [vmem:[%s619 + $0x150] sm:$0xff]
      %v663 = vld [vmem:[%s619 + $0x158] sm:$0xff]
      %v664 = vld [vmem:[%s619 + $0x160] sm:$0xff]
      %v665 = vld [vmem:[%s619 + $0x168] sm:$0xff]
      %v666 = vld [vmem:[%s619 + $0x170] sm:$0xff]
      %v667 = vld [vmem:[%s619 + $0x178] sm:$0xff]
      %v668 = vld [vmem:[%s619 + $0x180] sm:$0xff]
      %v669 = vld [vmem:[%s619 + $0x188] sm:$0xff]
      %v670 = vld [vmem:[%s619 + $0x190] sm:$0xff]
      %v671 = vld [vmem:[%s619 + $0x198] sm:$0xff]
      %v672 = vld [vmem:[%s619 + $0x1a0] sm:$0xff]
      %v673 = vld [vmem:[%s619 + $0x1a8] sm:$0xff]
      %v674 = vld [vmem:[%s619 + $0x1b0] sm:$0x1]
      %v675 = vld [vmem:[%s619 + $0x1b8] sm:$0x1]
      %v676 = vperm.slane %v463, 1
      %v677 = vperm.slane %v463, 5
      %v681 = vsel %vm532, %v674, 0
      %v684 = vsel %vm532, %v675, 0
      %686 = vmatpush.msra.mxu0 %v650
      %687 = vmatpush.msra.mxu0 %v648
      %688 = vmatpush.msra.mxu0 %v646
      %689 = vmatpush.msra.mxu0 %v644
      %690 = vmatpush.msra.mxu0 %v642
      %691 = vmatpush.msra.mxu0 %v640
      %692 = vmatpush.msra.mxu0 %v638
      %693 = vmatpush.msra.mxu0 %v636
      %694 = vmatpush.msra.mxu0 %v634
      %695 = vmatpush.msra.mxu0 %v632
      %696 = vmatpush.msra.mxu0 %v630
      %697 = vmatpush.msra.mxu0 %v628
      %698 = vmatpush.msra.mxu0 %v626
      %699 = vmatpush.msra.mxu0 %v624
      %700 = vmatpush.msra.mxu0 %v622
      %701 = vmatpush.msra.mxu0 %v620
      %702 = vmatmul.f32.gmra.mxu0 %v521
      %v703 = vpop.f32.mrf.mxu0
      %v704 = vadd.f32 %v676, %v703
      %705 = vdwg.mxu0
      %706 = vmatpush.msra.mxu0 0.0
      %707 = vmatpush.msra.mxu0 0.0
      %708 = vmatpush.msra.mxu0 0.0
      %709 = vmatpush.msra.mxu0 0.0
      %710 = vmatpush.msra.mxu0 %v681
      %711 = vmatpush.msra.mxu0 %v672
      %712 = vmatpush.msra.mxu0 %v670
      %713 = vmatpush.msra.mxu0 %v668
      %714 = vmatpush.msra.mxu0 %v666
      %715 = vmatpush.msra.mxu0 %v664
      %716 = vmatpush.msra.mxu0 %v662
      %717 = vmatpush.msra.mxu0 %v660
      %718 = vmatpush.msra.mxu0 %v658
      %719 = vmatpush.msra.mxu0 %v656
      %720 = vmatpush.msra.mxu0 %v654
      %721 = vmatpush.msra.mxu0 %v652
      %722 = vmatmul.f32.gmra.mxu0 %v530
      %v723 = vpop.f32.mrf.mxu0
      %v724 = vadd.f32 %v704, %v723
      %725 = vdwg.mxu0
      %726 = vmatpush.msra.mxu0 %v651
      %727 = vmatpush.msra.mxu0 %v649
      %728 = vmatpush.msra.mxu0 %v647
      %729 = vmatpush.msra.mxu0 %v645
      %730 = vmatpush.msra.mxu0 %v643
      %731 = vmatpush.msra.mxu0 %v641
      %732 = vmatpush.msra.mxu0 %v639
      %733 = vmatpush.msra.mxu0 %v637
      %734 = vmatpush.msra.mxu0 %v635
      %735 = vmatpush.msra.mxu0 %v633
      %736 = vmatpush.msra.mxu0 %v631
      %737 = vmatpush.msra.mxu0 %v629
      %738 = vmatpush.msra.mxu0 %v627
      %739 = vmatpush.msra.mxu0 %v625
      %740 = vmatpush.msra.mxu0 %v623
      %741 = vmatpush.msra.mxu0 %v621
      %742 = vmatmul.f32.gmra.mxu0 %v521
      %v743 = vpop.f32.mrf.mxu0
      %v744 = vadd.f32 %v677, %v743
      %745 = vdwg.mxu0
      %746 = vmatpush.msra.mxu0 0.0
      %747 = vmatpush.msra.mxu0 0.0
      %748 = vmatpush.msra.mxu0 0.0
      %749 = vmatpush.msra.mxu0 0.0
      %750 = vmatpush.msra.mxu0 %v684
      %751 = vmatpush.msra.mxu0 %v673
      %752 = vmatpush.msra.mxu0 %v671
      %753 = vmatpush.msra.mxu0 %v669
      %754 = vmatpush.msra.mxu0 %v667
      %755 = vmatpush.msra.mxu0 %v665
      %756 = vmatpush.msra.mxu0 %v663
      %757 = vmatpush.msra.mxu0 %v661
      %758 = vmatpush.msra.mxu0 %v659
      %759 = vmatpush.msra.mxu0 %v657
      %760 = vmatpush.msra.mxu0 %v655
      %761 = vmatpush.msra.mxu0 %v653
      %762 = vmatmul.f32.gmra.mxu0 %v530
      %v763 = vpop.f32.mrf.mxu0
      %v764 = vadd.f32 %v744, %v763
      %765 = vdwg.mxu0
      %s766 = scalar_lea.vmem %s419, 896
      %v767 = vld [vmem:[%s766] sm:$0xff]
      %v768 = vld [vmem:[%s766 + $0x8] sm:$0xff]
      %v769 = vld [vmem:[%s766 + $0x10] sm:$0xff]
      %v770 = vld [vmem:[%s766 + $0x18] sm:$0xff]
      %v771 = vld [vmem:[%s766 + $0x20] sm:$0xff]
      %v772 = vld [vmem:[%s766 + $0x28] sm:$0xff]
      %v773 = vld [vmem:[%s766 + $0x30] sm:$0xff]
      %v774 = vld [vmem:[%s766 + $0x38] sm:$0xff]
      %v775 = vld [vmem:[%s766 + $0x40] sm:$0xff]
      %v776 = vld [vmem:[%s766 + $0x48] sm:$0xff]
      %v777 = vld [vmem:[%s766 + $0x50] sm:$0xff]
      %v778 = vld [vmem:[%s766 + $0x58] sm:$0xff]
      %v779 = vld [vmem:[%s766 + $0x60] sm:$0xff]
      %v780 = vld [vmem:[%s766 + $0x68] sm:$0xff]
      %v781 = vld [vmem:[%s766 + $0x70] sm:$0xff]
      %v782 = vld [vmem:[%s766 + $0x78] sm:$0xff]
      %v783 = vld [vmem:[%s766 + $0x80] sm:$0xff]
      %v784 = vld [vmem:[%s766 + $0x88] sm:$0xff]
      %v785 = vld [vmem:[%s766 + $0x90] sm:$0xff]
      %v786 = vld [vmem:[%s766 + $0x98] sm:$0xff]
      %v787 = vld [vmem:[%s766 + $0xa0] sm:$0xff]
      %v788 = vld [vmem:[%s766 + $0xa8] sm:$0xff]
      %v789 = vld [vmem:[%s766 + $0xb0] sm:$0xff]
      %v790 = vld [vmem:[%s766 + $0xb8] sm:$0xff]
      %v791 = vld [vmem:[%s766 + $0xc0] sm:$0xff]
      %v792 = vld [vmem:[%s766 + $0xc8] sm:$0xff]
      %v793 = vld [vmem:[%s766 + $0xd0] sm:$0xff]
      %v794 = vld [vmem:[%s766 + $0xd8] sm:$0xff]
      %v795 = vld [vmem:[%s766 + $0xe0] sm:$0xff]
      %v796 = vld [vmem:[%s766 + $0xe8] sm:$0xff]
      %v797 = vld [vmem:[%s766 + $0xf0] sm:$0xff]
      %v798 = vld [vmem:[%s766 + $0xf8] sm:$0xff]
      %v799 = vld [vmem:[%s766 + $0x100] sm:$0xff]
      %v800 = vld [vmem:[%s766 + $0x108] sm:$0xff]
      %v801 = vld [vmem:[%s766 + $0x110] sm:$0xff]
      %v802 = vld [vmem:[%s766 + $0x118] sm:$0xff]
      %v803 = vld [vmem:[%s766 + $0x120] sm:$0xff]
      %v804 = vld [vmem:[%s766 + $0x128] sm:$0xff]
      %v805 = vld [vmem:[%s766 + $0x130] sm:$0xff]
      %v806 = vld [vmem:[%s766 + $0x138] sm:$0xff]
      %v807 = vld [vmem:[%s766 + $0x140] sm:$0xff]
      %v808 = vld [vmem:[%s766 + $0x148] sm:$0xff]
      %v809 = vld [vmem:[%s766 + $0x150] sm:$0xff]
      %v810 = vld [vmem:[%s766 + $0x158] sm:$0xff]
      %v811 = vld [vmem:[%s766 + $0x160] sm:$0xff]
      %v812 = vld [vmem:[%s766 + $0x168] sm:$0xff]
      %v813 = vld [vmem:[%s766 + $0x170] sm:$0xff]
      %v814 = vld [vmem:[%s766 + $0x178] sm:$0xff]
      %v815 = vld [vmem:[%s766 + $0x180] sm:$0xff]
      %v816 = vld [vmem:[%s766 + $0x188] sm:$0xff]
      %v817 = vld [vmem:[%s766 + $0x190] sm:$0xff]
      %v818 = vld [vmem:[%s766 + $0x198] sm:$0xff]
      %v819 = vld [vmem:[%s766 + $0x1a0] sm:$0xff]
      %v820 = vld [vmem:[%s766 + $0x1a8] sm:$0xff]
      %v821 = vld [vmem:[%s766 + $0x1b0] sm:$0x1]
      %v822 = vld [vmem:[%s766 + $0x1b8] sm:$0x1]
      %v823 = vperm.slane %v463, 2
      %v824 = vperm.slane %v463, 6
      %v828 = vsel %vm532, %v821, 0
      %v831 = vsel %vm532, %v822, 0
      %833 = vmatpush.msra.mxu0 %v797
      %834 = vmatpush.msra.mxu0 %v795
      %835 = vmatpush.msra.mxu0 %v793
      %836 = vmatpush.msra.mxu0 %v791
      %837 = vmatpush.msra.mxu0 %v789
      %838 = vmatpush.msra.mxu0 %v787
      %839 = vmatpush.msra.mxu0 %v785
      %840 = vmatpush.msra.mxu0 %v783
      %841 = vmatpush.msra.mxu0 %v781
      %842 = vmatpush.msra.mxu0 %v779
      %843 = vmatpush.msra.mxu0 %v777
      %844 = vmatpush.msra.mxu0 %v775
      %845 = vmatpush.msra.mxu0 %v773
      %846 = vmatpush.msra.mxu0 %v771
      %847 = vmatpush.msra.mxu0 %v769
      %848 = vmatpush.msra.mxu0 %v767
      %849 = vmatmul.f32.gmra.mxu0 %v521
      %v850 = vpop.f32.mrf.mxu0
      %v851 = vadd.f32 %v823, %v850
      %852 = vdwg.mxu0
      %853 = vmatpush.msra.mxu0 0.0
      %854 = vmatpush.msra.mxu0 0.0
      %855 = vmatpush.msra.mxu0 0.0
      %856 = vmatpush.msra.mxu0 0.0
      %857 = vmatpush.msra.mxu0 %v828
      %858 = vmatpush.msra.mxu0 %v819
      %859 = vmatpush.msra.mxu0 %v817
      %860 = vmatpush.msra.mxu0 %v815
      %861 = vmatpush.msra.mxu0 %v813
      %862 = vmatpush.msra.mxu0 %v811
      %863 = vmatpush.msra.mxu0 %v809
      %864 = vmatpush.msra.mxu0 %v807
      %865 = vmatpush.msra.mxu0 %v805
      %866 = vmatpush.msra.mxu0 %v803
      %867 = vmatpush.msra.mxu0 %v801
      %868 = vmatpush.msra.mxu0 %v799
      %869 = vmatmul.f32.gmra.mxu0 %v530
      %v870 = vpop.f32.mrf.mxu0
      %v871 = vadd.f32 %v851, %v870
      %872 = vdwg.mxu0
      %873 = vmatpush.msra.mxu0 %v798
      %874 = vmatpush.msra.mxu0 %v796
      %875 = vmatpush.msra.mxu0 %v794
      %876 = vmatpush.msra.mxu0 %v792
      %877 = vmatpush.msra.mxu0 %v790
      %878 = vmatpush.msra.mxu0 %v788
      %879 = vmatpush.msra.mxu0 %v786
      %880 = vmatpush.msra.mxu0 %v784
      %881 = vmatpush.msra.mxu0 %v782
      %882 = vmatpush.msra.mxu0 %v780
      %883 = vmatpush.msra.mxu0 %v778
      %884 = vmatpush.msra.mxu0 %v776
      %885 = vmatpush.msra.mxu0 %v774
      %886 = vmatpush.msra.mxu0 %v772
      %887 = vmatpush.msra.mxu0 %v770
      %888 = vmatpush.msra.mxu0 %v768
      %889 = vmatmul.f32.gmra.mxu0 %v521
      %v890 = vpop.f32.mrf.mxu0
      %v891 = vadd.f32 %v824, %v890
      %892 = vdwg.mxu0
      %893 = vmatpush.msra.mxu0 0.0
      %894 = vmatpush.msra.mxu0 0.0
      %895 = vmatpush.msra.mxu0 0.0
      %896 = vmatpush.msra.mxu0 0.0
      %897 = vmatpush.msra.mxu0 %v831
      %898 = vmatpush.msra.mxu0 %v820
      %899 = vmatpush.msra.mxu0 %v818
      %900 = vmatpush.msra.mxu0 %v816
      %901 = vmatpush.msra.mxu0 %v814
      %902 = vmatpush.msra.mxu0 %v812
      %903 = vmatpush.msra.mxu0 %v810
      %904 = vmatpush.msra.mxu0 %v808
      %905 = vmatpush.msra.mxu0 %v806
      %906 = vmatpush.msra.mxu0 %v804
      %907 = vmatpush.msra.mxu0 %v802
      %908 = vmatpush.msra.mxu0 %v800
      %909 = vmatmul.f32.gmra.mxu0 %v530
      %v910 = vpop.f32.mrf.mxu0
      %v911 = vadd.f32 %v891, %v910
      %912 = vdwg.mxu0
      %v913 = vld [vmem:[%s437] sm:$0xff]
      %v914 = vld [vmem:[%s437 + $0x8] sm:$0xff]
      %v915 = vld [vmem:[%s431] sm:$0xff]
      %v916 = vld [vmem:[%s431 + $0x8] sm:$0xff]
      %v917 = vld [vmem:[%s431 + $0x10] sm:$0xff]
      %v918 = vld [vmem:[%s431 + $0x18] sm:$0xff]
      %v919 = vld [vmem:[%s431 + $0x20] sm:$0xff]
      %v920 = vld [vmem:[%s431 + $0x28] sm:$0xff]
      %vm921 = vcmask 195584
      %v923 = vsel %vm921, %v913, 0
      %v926 = vsel %vm921, %v914, 0
      %928 = vmatpush.msra.mxu0 0.0
      %929 = vmatpush.msra.mxu0 0.0
      %930 = vmatpush.msra.mxu0 0.0
      %931 = vmatpush.msra.mxu0 0.0
      %932 = vmatpush.msra.mxu0 0.0
      %933 = vmatpush.msra.mxu0 0.0
      %934 = vmatpush.msra.mxu0 0.0
      %935 = vmatpush.msra.mxu0 0.0
      %936 = vmatpush.msra.mxu0 0.0
      %937 = vmatpush.msra.mxu0 0.0
      %938 = vmatpush.msra.mxu0 0.0
      %939 = vmatpush.msra.mxu0 0.0
      %940 = vmatpush.msra.mxu0 0.0
      %941 = vmatpush.msra.mxu0 %v919
      %942 = vmatpush.msra.mxu0 %v917
      %943 = vmatpush.msra.mxu0 %v915
      %944 = vmatmul.f32.gmra.mxu0 %v923
      %v945 = vpop.f32.mrf.mxu0
      %v946 = vadd.f32 0.0, %v945
      %947 = vmatmul.f32.gmra.mxu0 %v926
      %v948 = vpop.f32.mrf.mxu0
      %v949 = vadd.f32 0.0, %v948
      %950 = vdwg.mxu0
      %951 = vmatpush.msra.mxu0 0.0
      %952 = vmatpush.msra.mxu0 0.0
      %953 = vmatpush.msra.mxu0 0.0
      %954 = vmatpush.msra.mxu0 0.0
      %955 = vmatpush.msra.mxu0 0.0
      %956 = vmatpush.msra.mxu0 0.0
      %957 = vmatpush.msra.mxu0 0.0
      %958 = vmatpush.msra.mxu0 0.0
      %959 = vmatpush.msra.mxu0 0.0
      %960 = vmatpush.msra.mxu0 0.0
      %961 = vmatpush.msra.mxu0 0.0
      %962 = vmatpush.msra.mxu0 0.0
      %963 = vmatpush.msra.mxu0 0.0
      %964 = vmatpush.msra.mxu0 %v920
      %965 = vmatpush.msra.mxu0 %v918
      %966 = vmatpush.msra.mxu0 %v916
      %967 = vmatmul.f32.gmra.mxu0 %v923
      %v968 = vpop.f32.mrf.mxu0
      %v969 = vadd.f32 0.0, %v968
      %970 = vmatmul.f32.gmra.mxu0 %v926
      %v971 = vpop.f32.mrf.mxu0
      %v972 = vadd.f32 0.0, %v971
      %973 = vdwg.mxu0
      %v974 = vmul.f32 %v946, %v577
      %v975 = vmul.f32 %v969, %v617
      %v978 = vrot.slane %v724, 7
      %v979 = vrot.slane %v764, 7
      %v982 = vmul.f32 %v946, %v978
      %v983 = vmul.f32 %v969, %v979
      %v986 = vrot.slane %v982, 1
      %v987 = vrot.slane %v983, 1
      %v990 = vadd.f32 %v974, %v986
      %v991 = vadd.f32 %v975, %v987
      %v994 = vrot.slane %v871, 6
      %v995 = vrot.slane %v911, 6
      %v998 = vmul.f32 %v946, %v994
      %v999 = vmul.f32 %v969, %v995
      %v1002 = vrot.slane %v998, 2
      %v1003 = vrot.slane %v999, 2
      %v1006 = vadd.f32 %v990, %v1002
      %v1007 = vadd.f32 %v991, %v1003
      %v1010 = vrot.slane %v946, 3
      %v1011 = vrot.slane %v969, 3
      %v1014 = vadd.f32 %v1006, %v1010
      %v1015 = vadd.f32 %v1007, %v1011
      %v1018 = vrot.slane %v577, 4
      %v1019 = vrot.slane %v617, 4
      %v1022 = vmul.f32 %v946, %v1018
      %v1023 = vmul.f32 %v969, %v1019
      %v1024 = vrot.slane %v724, 3
      %v1025 = vrot.slane %v764, 3
      %v1028 = vmul.f32 %v946, %v1024
      %v1029 = vmul.f32 %v969, %v1025
      %v1032 = vrot.slane %v1028, 1
      %v1033 = vrot.slane %v1029, 1
      %v1036 = vadd.f32 %v1022, %v1032
      %v1037 = vadd.f32 %v1023, %v1033
      %v1038 = vrot.slane %v871, 2
      %v1039 = vrot.slane %v911, 2
      %v1042 = vmul.f32 %v946, %v1038
      %v1043 = vmul.f32 %v969, %v1039
      %v1046 = vrot.slane %v1042, 2
      %v1047 = vrot.slane %v1043, 2
      %v1050 = vadd.f32 %v1036, %v1046
      %v1051 = vadd.f32 %v1037, %v1047
      %v1052 = vadd.f32 %v1050, %v1010
      %v1053 = vadd.f32 %v1051, %v1011
      %v1054 = vmul.f32 %v949, %v577
      %v1055 = vmul.f32 %v972, %v617
      %v1056 = vmul.f32 %v949, %v978
      %v1057 = vmul.f32 %v972, %v979
      %v1060 = vrot.slane %v1056, 1
      %v1061 = vrot.slane %v1057, 1
      %v1064 = vadd.f32 %v1054, %v1060
      %v1065 = vadd.f32 %v1055, %v1061
      %v1066 = vmul.f32 %v949, %v994
      %v1067 = vmul.f32 %v972, %v995
      %v1070 = vrot.slane %v1066, 2
      %v1071 = vrot.slane %v1067, 2
      %v1074 = vadd.f32 %v1064, %v1070
      %v1075 = vadd.f32 %v1065, %v1071
      %v1078 = vrot.slane %v949, 3
      %v1079 = vrot.slane %v972, 3
      %v1082 = vadd.f32 %v1074, %v1078
      %v1083 = vadd.f32 %v1075, %v1079
      %v1086 = vrot.slane %v1052, 3
      %v1087 = vrot.slane %v1053, 3
      %v1092 = vrot.slane %v1082, 6
      %v1093 = vrot.slane %v1083, 6
      %v1096 = vsel %vm532, %v1014, %v1086
      %v1097 = vsel %vm532, %v1015, %v1087
      %vm1098 = vcmask 1041408
      %v1099 = vsel %vm1098, %v1096, %v1092
      %v1100 = vsel %vm1098, %v1097, %v1093
      %v1101 = vld [vmem:[%s441] sm:$0x7]
      %1103 = vset.pattern.permute.xlu0 0
      %1104 = vperm.xlu0 %1103, %v1101
      %v1105 = vpop.permute.xlu0 %1104
      %v1107 = vadd.f32 %v1099, %v1105
      %v1108 = vadd.f32 %v1100, %v1105
      %v1111 = vrot.slane %v1108, 4
      %vm1112 = vcmask 1043456
      %v1113 = vsel %vm1112, %v1107, %v1111
      %1115 = vst [vmem:[%s456] sm:$0x77] %v1113
      %p1116 = scmp.eq.s32.totalorder %s25, 0
      // Predicated region
      $region49: #{_lambda_.1} parent=47 // pred_check
        %p1117 = pneg %p1116
      $region50: #{_lambda_.1} parent=47 // pred_check_branch
        %1119 = sbr.rel (%p1117) target = $region52
      $region51: #{_lambda_.1} parent=47 // pred_region
        %vm1120 = vcmask 149504
        %1121 = vst.msk [vmem:[%s461] sm:$0x7] %vm1120, 0.0
      $region52: #{_lambda_.1} parent=47 // pred_fallthru
        _
      %v1122 = vld [vmem:[%s461] sm:$0x7]
      %v1123 = vld [vmem:[%s446] sm:$0xff]
      %v1124 = vld [vmem:[%s446 + $0x8] sm:$0xff]
      %v1125 = vld [vmem:[%s446 + $0x10] sm:$0xff]
      %v1126 = vld [vmem:[%s446 + $0x18] sm:$0xff]
      %v1127 = vld [vmem:[%s446 + $0x20] sm:$0xff]
      %v1128 = vld [vmem:[%s446 + $0x28] sm:$0xff]
      %v1129 = vld [vmem:[%s446 + $0x30] sm:$0xff]
      %v1130 = vld [vmem:[%s446 + $0x38] sm:$0xff]
      %v1131 = vld [vmem:[%s446 + $0x40] sm:$0xff]
      %v1132 = vld [vmem:[%s446 + $0x48] sm:$0xff]
      %v1133 = vld [vmem:[%s446 + $0x50] sm:$0xff]
      %v1134 = vld [vmem:[%s446 + $0x58] sm:$0xff]
      %v1135 = vld [vmem:[%s446 + $0x60] sm:$0xff]
      %v1136 = vld [vmem:[%s446 + $0x68] sm:$0xff]
      %v1137 = vld [vmem:[%s446 + $0x70] sm:$0xff]
      %v1138 = vld [vmem:[%s446 + $0x78] sm:$0xff]
      %v1139 = vld [vmem:[%s446 + $0x80] sm:$0xff]
      %v1140 = vld [vmem:[%s446 + $0x88] sm:$0xff]
      %v1141 = vld [vmem:[%s446 + $0x90] sm:$0xff]
      %v1142 = vld [vmem:[%s446 + $0x98] sm:$0xff]
      %v1143 = vld [vmem:[%s446 + $0xa0] sm:$0xff]
      %v1144 = vld [vmem:[%s446 + $0xa8] sm:$0xff]
      %v1145 = vld [vmem:[%s446 + $0xb0] sm:$0xff]
      %v1146 = vld [vmem:[%s446 + $0xb8] sm:$0xff]
      %v1147 = vld [vmem:[%s446 + $0xc0] sm:$0xff]
      %v1148 = vld [vmem:[%s446 + $0xc8] sm:$0xff]
      %v1149 = vld [vmem:[%s446 + $0xd0] sm:$0xff]
      %v1150 = vld [vmem:[%s446 + $0xd8] sm:$0xff]
      %v1151 = vld [vmem:[%s446 + $0xe0] sm:$0xff]
      %v1152 = vld [vmem:[%s446 + $0xe8] sm:$0xff]
      %v1153 = vld [vmem:[%s446 + $0xf0] sm:$0xff]
      %v1154 = vld [vmem:[%s446 + $0xf8] sm:$0xff]
      %1155 = vmatpush.msra.mxu0 %v1138
      %1156 = vmatpush.msra.mxu0 %v1137
      %1157 = vmatpush.msra.mxu0 %v1136
      %1158 = vmatpush.msra.mxu0 %v1135
      %1159 = vmatpush.msra.mxu0 %v1134
      %1160 = vmatpush.msra.mxu0 %v1133
      %1161 = vmatpush.msra.mxu0 %v1132
      %1162 = vmatpush.msra.mxu0 %v1131
      %1163 = vmatpush.msra.mxu0 %v1130
      %1164 = vmatpush.msra.mxu0 %v1129
      %1165 = vmatpush.msra.mxu0 %v1128
      %1166 = vmatpush.msra.mxu0 %v1127
      %1167 = vmatpush.msra.mxu0 %v1126
      %1168 = vmatpush.msra.mxu0 %v1125
      %1169 = vmatpush.msra.mxu0 %v1124
      %1170 = vmatpush.msra.mxu0 %v1123
      %1171 = vmatmul.f32.gmra.mxu0 %v1107
      %v1172 = vpop.f32.mrf.mxu0
      %v1173 = vadd.f32 0.0, %v1172
      %1174 = vdwg.mxu0
      %1175 = vmatpush.msra.mxu0 %v1154
      %1176 = vmatpush.msra.mxu0 %v1153
      %1177 = vmatpush.msra.mxu0 %v1152
      %1178 = vmatpush.msra.mxu0 %v1151
      %1179 = vmatpush.msra.mxu0 %v1150
      %1180 = vmatpush.msra.mxu0 %v1149
      %1181 = vmatpush.msra.mxu0 %v1148
      %1182 = vmatpush.msra.mxu0 %v1147
      %1183 = vmatpush.msra.mxu0 %v1146
      %1184 = vmatpush.msra.mxu0 %v1145
      %1185 = vmatpush.msra.mxu0 %v1144
      %1186 = vmatpush.msra.mxu0 %v1143
      %1187 = vmatpush.msra.mxu0 %v1142
      %1188 = vmatpush.msra.mxu0 %v1141
      %1189 = vmatpush.msra.mxu0 %v1140
      %1190 = vmatpush.msra.mxu0 %v1139
      %1191 = vmatmul.f32.gmra.mxu0 %v1108
      %v1192 = vpop.f32.mrf.mxu0
      %v1193 = vadd.f32 %v1173, %v1192
      %1194 = vdwg.mxu0
      %v1195 = vadd.f32 %v1122, %v1193
      %vm1196 = vcmask 149504
      %1197 = vst.msk [vmem:[%s461] sm:$0x7] %vm1196, %v1195
      %s1198 = smul.u32 2, %s25
      %p1199 = scmp.lt.s32.totalorder %s24, 1
      %s1200 = scalar_select %p1199, %s24, 1
      %p1201 = scmp.lt.s32.totalorder %s1198, 1
      %s1202 = scalar_select %p1201, %s1198, 1
      %s1203 = smul.addr %s1200, 2
      %s1204 = sadd.s32 %s1202, %s1203
      %s1205 = smul.addr %s1204, 4
      %s1206 = scalar_lea.vmem %s7, %s1205
      %p1207 = scmp.lt.s32.totalorder %s24, 1
      %s1208 = scalar_select %p1207, %s24, 1
      %s1209 = smul.addr %s1208, 4
      %s1210 = scalar_lea.vmem %s8, %s1209
      // Predicated region
      $region53: #{_lambda_.1} parent=47 // pred_check
        %p1211 = pneg %p234
      $region54: #{_lambda_.1} parent=47 // pred_check_branch
        %1213 = sbr.rel (%p1211) target = $region56
      $region55: #{_lambda_.1} parent=47 // pred_region
        %s1214 = smul.u32 2, %s25
      $region56: #{_lambda_.1} parent=47 // pred_fallthru
        _
      // Predicated region
      $region57: #{_lambda_.1} parent=47 // pred_check
        %p1215 = pneg %p260
      $region58: #{_lambda_.1} parent=47 // pred_check_branch
        %1217 = sbr.rel (%p1215) target = $region60
      $region59: #{_lambda_.1} parent=47 // pred_region
        _
      $region60: #{_lambda_.1} parent=47 // pred_fallthru
        _
    $region48: #{_lambda_.1} parent=5 // pred_fallthru
      _
    %p1218 = scmp.le.s32.totalorder 2, %s15
    // Predicated region
    $region61: #{_lambda_.1} parent=5 // pred_check
      %p1219 = pneg %p1218
    $region62: #{_lambda_.1} parent=5 // pred_check_branch
      %1221 = sbr.rel (%p1219) target = $region64
    $region63: #{_lambda_.1} parent=5 // pred_region
      %s1222 = ssub.s32 %s15, 2
      // Predicated region
      $region65: #{_lambda_.1} parent=63 // pred_check
        %p1223 = pneg %p240
      $region66: #{_lambda_.1} parent=63 // pred_check_branch
        %1225 = sbr.rel (%p1223) target = $region68
      $region67: #{_lambda_.1} parent=63 // pred_region
        %s1226 = smul.u32 2, %s27
        %p1227 = scmp.lt.s32.totalorder %s26, 1
        %s1228 = scalar_select %p1227, %s26, 1
        %p1229 = scmp.lt.s32.totalorder %s1226, 1
        %s1230 = scalar_select %p1229, %s1226, 1
        %s1231 = smul.addr %s1228, 2
        %s1232 = sadd.s32 %s1230, %s1231
        %s1233 = smul.addr %s1232, 4
        %s1234 = scalar_lea.vmem %s7, %s1233
      $region68: #{_lambda_.1} parent=63 // pred_fallthru
        _
      // Predicated region
      $region69: #{_lambda_.1} parent=63 // pred_check
        %p1235 = pneg %p266
      $region70: #{_lambda_.1} parent=63 // pred_check_branch
        %1237 = sbr.rel (%p1235) target = $region72
      $region71: #{_lambda_.1} parent=63 // pred_region
        %p1238 = scmp.lt.s32.totalorder %s26, 1
        %s1239 = scalar_select %p1238, %s26, 1
        %s1240 = smul.addr %s1239, 4
        %s1241 = scalar_lea.vmem %s8, %s1240
      $region72: #{_lambda_.1} parent=63 // pred_fallthru
        _
    $region64: #{_lambda_.1} parent=5 // pred_fallthru
      _
  $region6: #{_lambda_.1} parent=0 // loop_footer
    %s19 = sadd.s32 1, %s15
  $region7: #{_lambda_.1} parent=0 // loop_footer_branch
    %14 = sbr.rel target = $region3
  $region8: #{_lambda_.1} parent=0 // loop_exit
    _

</llo_original>
